<compile_context>
chip_gen: v5e
topology: v5e:2x2
jax: 0.10.0
libtpu: 0.0.40
codegen_flags: <defaults>
</compile_context>

<pallas_src>
import functools

import jax
import jax.numpy as jnp
from jax import lax
from jax.experimental import pallas as pl
from jax.experimental.pallas import tpu as pltpu


def _relu6(x):
    return jnp.clip(x, 0.0, 6.0)


def _inverted_residual_kernel(
    x_ref,       # (1, H*W, Cin)        bf16  NHWC-flattened input
    w1_ref,      # (Cin, Cmid)          bf16  expand 1x1, BN scale folded
    b1_ref,      # (1, Cmid)            f32   folded BN bias
    kdw_ref,     # (3, 3, Cmid)         f32   depthwise 3x3, BN scale folded
    b2_ref,      # (1, Cmid)            f32
    w3t_ref,     # (Cout, Cmid)         bf16  project 1x1 (transposed), scale folded
    *rest,       # [wsct_ref (Cout, Cin) bf16  -- only when stride == 1]
                 # bpr_ref (Cout, 1) f32, o_ref (1, Cout, Hout*Wout) f32,
                 # pad_ref scratch (H+2, W+2, Cmid) f32
    stride, H, W, Hout, Wout,
):
    if stride == 1:
        wsct_ref, bpr_ref, o_ref, pad_ref = rest
    else:
        bpr_ref, o_ref, pad_ref = rest

    Cmid = w1_ref.shape[1]
    Cout = w3t_ref.shape[0]

    x2d = x_ref[0]                                        # (H*W, Cin) bf16

    # --- 1) 1x1 expand conv (MXU, bf16 in / f32 acc) + folded-BN bias + ReLU6 ---
    h1 = jnp.dot(x2d, w1_ref[...], preferred_element_type=jnp.float32)
    h1 = _relu6(h1 + b1_ref[...])                         # (H*W, Cmid) f32
    h1 = h1.reshape(H, W, Cmid)

    # --- 2) depthwise 3x3 (pad=1, stride) via zero-padded scratch ---
    # Only the 4 border strips are zeroed; the interior is fully overwritten.
    zrow = jnp.zeros((1, W + 2, Cmid), jnp.float32)
    zcol = jnp.zeros((H, 1, Cmid), jnp.float32)
    pad_ref[0:1, :, :] = zrow
    pad_ref[H + 1:H + 2, :, :] = zrow
    pad_ref[1:H + 1, 0:1, :] = zcol
    pad_ref[1:H + 1, W + 1:W + 2, :] = zcol
    pad_ref[1:H + 1, 1:W + 1, :] = h1

    acc = jnp.zeros((Hout, Wout, Cmid), jnp.float32)
    for dh in range(3):                                   # static 3x3 tap loop
        for dw in range(3):
            if stride == 1:
                tap = pad_ref[dh:dh + Hout, dw:dw + Wout, :]
            else:
                tap = pad_ref[dh:dh + (Hout - 1) * stride + 1,
                              dw:dw + (Wout - 1) * stride + 1, :]
                tap = tap[::stride, ::stride, :]
            acc = acc + tap * kdw_ref[dh, dw, :]
    h2 = _relu6(acc + b2_ref[0])                          # (Hout, Wout, Cmid) f32

    # --- 3 + 4) project 1x1 (+ shortcut when stride == 1): one f32 accumulator,
    #            one fused bias epilogue, computed transposed so lanes = Hout*Wout ---
    h2_2d = h2.reshape(Hout * Wout, Cmid).astype(jnp.bfloat16)
    contract_last = (((1,), (1,)), ((), ()))              # A @ B.T (no materialized T)
    out_t = lax.dot_general(w3t_ref[...], h2_2d, contract_last,
                            preferred_element_type=jnp.float32)   # (Cout, Hout*Wout)
    if stride == 1:                                       # static Python branch
        out_t = out_t + lax.dot_general(wsct_ref[...], x2d, contract_last,
                                        preferred_element_type=jnp.float32)
    out_t = out_t + bpr_ref[...]
    o_ref[...] = out_t.reshape(1, Cout, Hout * Wout)


def _fold_bn(w, b, bn, eps=1e-5):
    """Fold eval-mode BatchNorm into the preceding conv: returns (w', b')."""
    scale = bn["gamma"] / jnp.sqrt(bn["var"] + eps)       # per output channel
    return w * scale, scale * (b - bn["mean"]) + bn["beta"]


def inverted_residual(x_nchw, params, *, stride):
    """MobileNetV2 InvertedResidual forward. NCHW in / NCHW out (PyTorch layout)."""
    N, Cin, H, W = x_nchw.shape
    Hout = (H - 1) // stride + 1
    Wout = (W - 1) // stride + 1

    # Host-side BN folding / weight packing (pure XLA, outside the kernel).
    w1f, b1f = _fold_bn(params["w1"], params["b1"], params["bn1"])
    kdwf, b2f = _fold_bn(params["kdw"], params["b2"], params["bn2"])
    w3f, b3f = _fold_bn(params["w3"], params["b3"], params["bn3"])
    Cmid = w1f.shape[1]
    Cout = w3f.shape[1]

    x_nhwc = jnp.transpose(x_nchw, (0, 2, 3, 1)).astype(jnp.float32)
    x_flat = x_nhwc.reshape(N, H * W, Cin).astype(jnp.bfloat16)

    w3t = jnp.transpose(w3f).astype(jnp.bfloat16)         # (Cout, Cmid)
    if stride == 1:
        wscf, bscf = _fold_bn(params["wsc"], params["bsc"], params["bnsc"])
        wsct = jnp.transpose(wscf).astype(jnp.bfloat16)   # (Cout, Cin)
        bpr = (b3f + bscf).reshape(Cout, 1).astype(jnp.float32)
    else:
        bpr = b3f.reshape(Cout, 1).astype(jnp.float32)

    kernel = functools.partial(_inverted_residual_kernel, stride=stride,
                               H=H, W=W, Hout=Hout, Wout=Wout)

    in_specs = [
        pl.BlockSpec((1, H * W, Cin), lambda n: (n, 0, 0)),
        pl.BlockSpec((Cin, Cmid), lambda n: (0, 0)),
        pl.BlockSpec((1, Cmid), lambda n: (0, 0)),
        pl.BlockSpec((3, 3, Cmid), lambda n: (0, 0, 0)),
        pl.BlockSpec((1, Cmid), lambda n: (0, 0)),
        pl.BlockSpec((Cout, Cmid), lambda n: (0, 0)),
    ]
    args = [x_flat,
            w1f.astype(jnp.bfloat16), b1f.reshape(1, Cmid).astype(jnp.float32),
            kdwf.astype(jnp.float32), b2f.reshape(1, Cmid).astype(jnp.float32),
            w3t]
    if stride == 1:
        in_specs.append(pl.BlockSpec((Cout, Cin), lambda n: (0, 0)))
        args.append(wsct)
    in_specs.append(pl.BlockSpec((Cout, 1), lambda n: (0, 0)))
    args.append(bpr)

    out = pl.pallas_call(
        kernel,
        out_shape=jax.ShapeDtypeStruct((N, Cout, Hout * Wout), jnp.float32),
        grid_spec=pltpu.PrefetchScalarGridSpec(
            num_scalar_prefetch=0,
            grid=(N,),
            in_specs=in_specs,
            out_specs=pl.BlockSpec((1, Cout, Hout * Wout), lambda n: (n, 0, 0)),
            scratch_shapes=[pltpu.VMEM((H + 2, W + 2, Cmid), jnp.float32)],
        ),
        compiler_params=pltpu.CompilerParams(dimension_semantics=("parallel",)),
    )(*args)

    return out.reshape(N, Cout, Hout, Wout)               # already NCHW


def init_params(key, in_channels, out_channels, expansion_factor):
    """Deterministic synthetic parameters matching the PyTorch module structure."""
    mid = in_channels * expansion_factor
    ks = iter(jax.random.split(key, 24))

    def bn(c):
        return dict(
            gamma=jax.random.uniform(next(ks), (c,), minval=0.5, maxval=1.5),
            beta=0.1 * jax.random.normal(next(ks), (c,)),
            mean=0.1 * jax.random.normal(next(ks), (c,)),
            var=jax.random.uniform(next(ks), (c,), minval=0.5, maxval=1.5),
        )

    return dict(
        w1=0.2 * jax.random.normal(next(ks), (in_channels, mid), jnp.float32),
        b1=0.1 * jax.random.normal(next(ks), (mid,), jnp.float32),
        bn1=bn(mid),
        kdw=0.2 * jax.random.normal(next(ks), (3, 3, mid), jnp.float32),
        b2=0.1 * jax.random.normal(next(ks), (mid,), jnp.float32),
        bn2=bn(mid),
        w3=0.2 * jax.random.normal(next(ks), (mid, out_channels), jnp.float32),
        b3=0.1 * jax.random.normal(next(ks), (out_channels,), jnp.float32),
        bn3=bn(out_channels),
        wsc=0.2 * jax.random.normal(next(ks), (in_channels, out_channels), jnp.float32),
        bsc=0.1 * jax.random.normal(next(ks), (out_channels,), jnp.float32),
        bnsc=bn(out_channels),
    )


def reference(x_nchw, params, *, stride):
    """Pure-JAX f32 reference: conv -> BN -> ReLU6, PyTorch semantics (eval-mode BN)."""
    eps = 1e-5
    hp = lax.Precision.HIGHEST

    def bn(y, p):
        return p["gamma"] * (y - p["mean"]) / jnp.sqrt(p["var"] + eps) + p["beta"]

    x = jnp.transpose(x_nchw, (0, 2, 3, 1)).astype(jnp.float32)   # NHWC
    h1 = jnp.einsum("nhwc,cm->nhwm", x, params["w1"], precision=hp) + params["b1"]
    h1 = jnp.clip(bn(h1, params["bn1"]), 0.0, 6.0)
    k = params["kdw"][:, :, None, :]                               # HWIO, I=1 (depthwise)
    dw = lax.conv_general_dilated(
        h1, k, window_strides=(stride, stride), padding=((1, 1), (1, 1)),
        dimension_numbers=("NHWC", "HWIO", "NHWC"),
        feature_group_count=h1.shape[-1], precision=hp) + params["b2"]
    h2 = jnp.clip(bn(dw, params["bn2"]), 0.0, 6.0)
    out = bn(jnp.einsum("nhwc,cm->nhwm", h2, params["w3"], precision=hp)
             + params["b3"], params["bn3"])
    if stride == 1:
        out = out + bn(jnp.einsum("nhwc,cm->nhwm", x, params["wsc"], precision=hp)
                       + params["bsc"], params["bnsc"])
    return jnp.transpose(out, (0, 3, 1, 2))


if __name__ == "__main__":
    N, C_IN, H, W = 2, 4, 16, 16
    C_OUT, EXPANSION, STRIDE = 4, 2, 1

    key = jax.random.PRNGKey(0)
    kx, kp = jax.random.split(key)
    x = jax.random.normal(kx, (N, C_IN, H, W), jnp.float32)        # NCHW, like PyTorch
    params = init_params(kp, C_IN, C_OUT, EXPANSION)

    y = jax.block_until_ready(inverted_residual(x, params, stride=STRIDE))
    y_ref = jax.block_until_ready(reference(x, params, stride=STRIDE))

    assert y.shape == y_ref.shape, (y.shape, y_ref.shape)
    err = float(jnp.max(jnp.abs(y - y_ref)))
    # bf16 MXU operands (intentional, per perf guidance) give ~1e-2-level deviation
    # from the pure-f32 reference; structural bugs would be O(0.3+).
    assert err < 7.5e-2, err

    print("KERNEL_OK")
</pallas_src>

<mosaic_0001>
module attributes {stable_mosaic.version = 11 : i64} {
  func.func @_inverted_residual_kernel(%arg0: i32, %arg1: memref<1x256x4xbf16, #tpu.memory_space<vmem>>, %arg2: memref<4x8xbf16, #tpu.memory_space<vmem>>, %arg3: memref<1x8xf32, #tpu.memory_space<vmem>>, %arg4: memref<3x3x8xf32, #tpu.memory_space<vmem>>, %arg5: memref<1x8xf32, #tpu.memory_space<vmem>>, %arg6: memref<4x8xbf16, #tpu.memory_space<vmem>>, %arg7: memref<4x4xbf16, #tpu.memory_space<vmem>>, %arg8: memref<4x1xf32, #tpu.memory_space<vmem>>, %arg9: memref<1x4x256xf32, #tpu.memory_space<vmem>>, %arg10: memref<18x18x8xf32, #tpu.memory_space<vmem>>) attributes {dimension_semantics = [#tpu.dimension_semantics<parallel>], iteration_bounds = array<i64: 2>, scalar_prefetch = 0 : i64, scratch_operands = 1 : i64, tpu.core_type = #tpu.core_type<tc>, window_params = [{transform_indices = @transform_0, window_bounds = array<i64: 1, 256, 4>}, {pipeline_mode = #tpu.pipeline_mode<synchronous>, transform_indices = @transform_1, window_bounds = array<i64: 4, 8>}, {pipeline_mode = #tpu.pipeline_mode<synchronous>, transform_indices = @transform_2, window_bounds = array<i64: 1, 8>}, {pipeline_mode = #tpu.pipeline_mode<synchronous>, transform_indices = @transform_3, window_bounds = array<i64: 3, 3, 8>}, {pipeline_mode = #tpu.pipeline_mode<synchronous>, transform_indices = @transform_4, window_bounds = array<i64: 1, 8>}, {pipeline_mode = #tpu.pipeline_mode<synchronous>, transform_indices = @transform_5, window_bounds = array<i64: 4, 8>}, {pipeline_mode = #tpu.pipeline_mode<synchronous>, transform_indices = @transform_6, window_bounds = array<i64: 4, 4>}, {pipeline_mode = #tpu.pipeline_mode<synchronous>, transform_indices = @transform_7, window_bounds = array<i64: 4, 1>}, {transform_indices = @transform_8, window_bounds = array<i64: 1, 4, 256>}]} {
    %c0 = arith.constant 0 : index
    %c0_0 = arith.constant 0 : index
    %c0_1 = arith.constant 0 : index
    %0 = vector.load %arg1[%c0, %c0_0, %c0_1] : memref<1x256x4xbf16, #tpu.memory_space<vmem>>, vector<1x256x4xbf16>
    %1 = vector.shape_cast %0 : vector<1x256x4xbf16> to vector<256x4xbf16>
    %c0_2 = arith.constant 0 : index
    %c0_3 = arith.constant 0 : index
    %2 = vector.load %arg2[%c0_2, %c0_3] : memref<4x8xbf16, #tpu.memory_space<vmem>>, vector<4x8xbf16>
    %cst = arith.constant dense<0.000000e+00> : vector<256x8xf32>
    %3 = tpu.matmul %1, %2, %cst {dimension_numbers = #tpu.dot_dimension_numbers<[1], [0], [0], [1], [0, 0, 1, 1], [], []>} : vector<256x4xbf16>, vector<4x8xbf16>, vector<256x8xf32> -> vector<256x8xf32>
    %c0_4 = arith.constant 0 : index
    %c0_5 = arith.constant 0 : index
    %4 = vector.load %arg3[%c0_4, %c0_5] : memref<1x8xf32, #tpu.memory_space<vmem>>, vector<1x8xf32>
    %5 = vector.broadcast %4 : vector<1x8xf32> to vector<256x8xf32>
    %6 = arith.addf %3, %5 : vector<256x8xf32>
    %cst_6 = arith.constant 0.000000e+00 : f32
    %cst_7 = arith.constant 6.000000e+00 : f32
    %7 = vector.broadcast %cst_6 : f32 to vector<256x8xf32>
    %8 = arith.maximumf %7, %6 : vector<256x8xf32>
    %9 = vector.broadcast %cst_7 : f32 to vector<256x8xf32>
    %10 = arith.minimumf %9, %8 : vector<256x8xf32>
    %11 = vector.shape_cast %10 : vector<256x8xf32> to vector<16x16x8xf32>
    %cst_8 = arith.constant 0.000000e+00 : f32
    %12 = vector.broadcast %cst_8 : f32 to vector<1x18x8xf32>
    %cst_9 = arith.constant 0.000000e+00 : f32
    %13 = vector.broadcast %cst_9 : f32 to vector<16x1x8xf32>
    %c0_10 = arith.constant 0 : index
    %c0_11 = arith.constant 0 : index
    %c0_12 = arith.constant 0 : index
    %14 = vector.load %arg10[%c0_10, %c0_11, %c0_12] : memref<18x18x8xf32, #tpu.memory_space<vmem>>, vector<1x18x8xf32>
    tpu.vector_store %arg10[%c0_10, %c0_11, %c0_12], %12 {strides = array<i32>} : memref<18x18x8xf32, #tpu.memory_space<vmem>>, vector<1x18x8xf32>,
    %c17 = arith.constant 17 : index
    %c0_13 = arith.constant 0 : index
    %c0_14 = arith.constant 0 : index
    %15 = vector.load %arg10[%c17, %c0_13, %c0_14] : memref<18x18x8xf32, #tpu.memory_space<vmem>>, vector<1x18x8xf32>
    tpu.vector_store %arg10[%c17, %c0_13, %c0_14], %12 {strides = array<i32>} : memref<18x18x8xf32, #tpu.memory_space<vmem>>, vector<1x18x8xf32>,
    %c1 = arith.constant 1 : index
    %c0_15 = arith.constant 0 : index
    %c0_16 = arith.constant 0 : index
    %16 = vector.load %arg10[%c1, %c0_15, %c0_16] : memref<18x18x8xf32, #tpu.memory_space<vmem>>, vector<16x1x8xf32>
    tpu.vector_store %arg10[%c1, %c0_15, %c0_16], %13 {strides = array<i32>} : memref<18x18x8xf32, #tpu.memory_space<vmem>>, vector<16x1x8xf32>,
    %c1_17 = arith.constant 1 : index
    %c17_18 = arith.constant 17 : index
    %c0_19 = arith.constant 0 : index
    %17 = vector.load %arg10[%c1_17, %c17_18, %c0_19] : memref<18x18x8xf32, #tpu.memory_space<vmem>>, vector<16x1x8xf32>
    tpu.vector_store %arg10[%c1_17, %c17_18, %c0_19], %13 {strides = array<i32>} : memref<18x18x8xf32, #tpu.memory_space<vmem>>, vector<16x1x8xf32>,
    %c1_20 = arith.constant 1 : index
    %c1_21 = arith.constant 1 : index
    %c0_22 = arith.constant 0 : index
    %18 = vector.load %arg10[%c1_20, %c1_21, %c0_22] : memref<18x18x8xf32, #tpu.memory_space<vmem>>, vector<16x16x8xf32>
    tpu.vector_store %arg10[%c1_20, %c1_21, %c0_22], %11 {strides = array<i32>} : memref<18x18x8xf32, #tpu.memory_space<vmem>>, vector<16x16x8xf32>,
    %cst_23 = arith.constant 0.000000e+00 : f32
    %19 = vector.broadcast %cst_23 : f32 to vector<16x16x8xf32>
    %c0_24 = arith.constant 0 : index
    %c0_25 = arith.constant 0 : index
    %c0_26 = arith.constant 0 : index
    %20 = vector.load %arg10[%c0_24, %c0_25, %c0_26] : memref<18x18x8xf32, #tpu.memory_space<vmem>>, vector<16x16x8xf32>
    %c0_27 = arith.constant 0 : index
    %c0_28 = arith.constant 0 : index
    %c0_29 = arith.constant 0 : index
    %21 = vector.load %arg4[%c0_27, %c0_28, %c0_29] : memref<3x3x8xf32, #tpu.memory_space<vmem>>, vector<1x1x8xf32>
    %22 = vector.shape_cast %21 : vector<1x1x8xf32> to vector<8xf32>
    %23 = vector.shape_cast %22 : vector<8xf32> to vector<1x1x8xf32>
    %24 = vector.broadcast %23 : vector<1x1x8xf32> to vector<16x16x8xf32>
    %25 = arith.mulf %20, %24 : vector<16x16x8xf32>
    %26 = arith.addf %19, %25 : vector<16x16x8xf32>
    %c0_30 = arith.constant 0 : index
    %c1_31 = arith.constant 1 : index
    %c0_32 = arith.constant 0 : index
    %27 = vector.load %arg10[%c0_30, %c1_31, %c0_32] : memref<18x18x8xf32, #tpu.memory_space<vmem>>, vector<16x16x8xf32>
    %c0_33 = arith.constant 0 : index
    %c1_34 = arith.constant 1 : index
    %c0_35 = arith.constant 0 : index
    %28 = vector.load %arg4[%c0_33, %c1_34, %c0_35] : memref<3x3x8xf32, #tpu.memory_space<vmem>>, vector<1x1x8xf32>
    %29 = vector.shape_cast %28 : vector<1x1x8xf32> to vector<8xf32>
    %30 = vector.shape_cast %29 : vector<8xf32> to vector<1x1x8xf32>
    %31 = vector.broadcast %30 : vector<1x1x8xf32> to vector<16x16x8xf32>
    %32 = arith.mulf %27, %31 : vector<16x16x8xf32>
    %33 = arith.addf %26, %32 : vector<16x16x8xf32>
    %c0_36 = arith.constant 0 : index
    %c2 = arith.constant 2 : index
    %c0_37 = arith.constant 0 : index
    %34 = vector.load %arg10[%c0_36, %c2, %c0_37] : memref<18x18x8xf32, #tpu.memory_space<vmem>>, vector<16x16x8xf32>
    %c0_38 = arith.constant 0 : index
    %c2_39 = arith.constant 2 : index
    %c0_40 = arith.constant 0 : index
    %35 = vector.load %arg4[%c0_38, %c2_39, %c0_40] : memref<3x3x8xf32, #tpu.memory_space<vmem>>, vector<1x1x8xf32>
    %36 = vector.shape_cast %35 : vector<1x1x8xf32> to vector<8xf32>
    %37 = vector.shape_cast %36 : vector<8xf32> to vector<1x1x8xf32>
    %38 = vector.broadcast %37 : vector<1x1x8xf32> to vector<16x16x8xf32>
    %39 = arith.mulf %34, %38 : vector<16x16x8xf32>
    %40 = arith.addf %33, %39 : vector<16x16x8xf32>
    %c1_41 = arith.constant 1 : index
    %c0_42 = arith.constant 0 : index
    %c0_43 = arith.constant 0 : index
    %41 = vector.load %arg10[%c1_41, %c0_42, %c0_43] : memref<18x18x8xf32, #tpu.memory_space<vmem>>, vector<16x16x8xf32>
    %c1_44 = arith.constant 1 : index
    %c0_45 = arith.constant 0 : index
    %c0_46 = arith.constant 0 : index
    %42 = vector.load %arg4[%c1_44, %c0_45, %c0_46] : memref<3x3x8xf32, #tpu.memory_space<vmem>>, vector<1x1x8xf32>
    %43 = vector.shape_cast %42 : vector<1x1x8xf32> to vector<8xf32>
    %44 = vector.shape_cast %43 : vector<8xf32> to vector<1x1x8xf32>
    %45 = vector.broadcast %44 : vector<1x1x8xf32> to vector<16x16x8xf32>
    %46 = arith.mulf %41, %45 : vector<16x16x8xf32>
    %47 = arith.addf %40, %46 : vector<16x16x8xf32>
    %c1_47 = arith.constant 1 : index
    %c1_48 = arith.constant 1 : index
    %c0_49 = arith.constant 0 : index
    %48 = vector.load %arg10[%c1_47, %c1_48, %c0_49] : memref<18x18x8xf32, #tpu.memory_space<vmem>>, vector<16x16x8xf32>
    %c1_50 = arith.constant 1 : index
    %c1_51 = arith.constant 1 : index
    %c0_52 = arith.constant 0 : index
    %49 = vector.load %arg4[%c1_50, %c1_51, %c0_52] : memref<3x3x8xf32, #tpu.memory_space<vmem>>, vector<1x1x8xf32>
    %50 = vector.shape_cast %49 : vector<1x1x8xf32> to vector<8xf32>
    %51 = vector.shape_cast %50 : vector<8xf32> to vector<1x1x8xf32>
    %52 = vector.broadcast %51 : vector<1x1x8xf32> to vector<16x16x8xf32>
    %53 = arith.mulf %48, %52 : vector<16x16x8xf32>
    %54 = arith.addf %47, %53 : vector<16x16x8xf32>
    %c1_53 = arith.constant 1 : index
    %c2_54 = arith.constant 2 : index
    %c0_55 = arith.constant 0 : index
    %55 = vector.load %arg10[%c1_53, %c2_54, %c0_55] : memref<18x18x8xf32, #tpu.memory_space<vmem>>, vector<16x16x8xf32>
    %c1_56 = arith.constant 1 : index
    %c2_57 = arith.constant 2 : index
    %c0_58 = arith.constant 0 : index
    %56 = vector.load %arg4[%c1_56, %c2_57, %c0_58] : memref<3x3x8xf32, #tpu.memory_space<vmem>>, vector<1x1x8xf32>
    %57 = vector.shape_cast %56 : vector<1x1x8xf32> to vector<8xf32>
    %58 = vector.shape_cast %57 : vector<8xf32> to vector<1x1x8xf32>
    %59 = vector.broadcast %58 : vector<1x1x8xf32> to vector<16x16x8xf32>
    %60 = arith.mulf %55, %59 : vector<16x16x8xf32>
    %61 = arith.addf %54, %60 : vector<16x16x8xf32>
    %c2_59 = arith.constant 2 : index
    %c0_60 = arith.constant 0 : index
    %c0_61 = arith.constant 0 : index
    %62 = vector.load %arg10[%c2_59, %c0_60, %c0_61] : memref<18x18x8xf32, #tpu.memory_space<vmem>>, vector<16x16x8xf32>
    %c2_62 = arith.constant 2 : index
    %c0_63 = arith.constant 0 : index
    %c0_64 = arith.constant 0 : index
    %63 = vector.load %arg4[%c2_62, %c0_63, %c0_64] : memref<3x3x8xf32, #tpu.memory_space<vmem>>, vector<1x1x8xf32>
    %64 = vector.shape_cast %63 : vector<1x1x8xf32> to vector<8xf32>
    %65 = vector.shape_cast %64 : vector<8xf32> to vector<1x1x8xf32>
    %66 = vector.broadcast %65 : vector<1x1x8xf32> to vector<16x16x8xf32>
    %67 = arith.mulf %62, %66 : vector<16x16x8xf32>
    %68 = arith.addf %61, %67 : vector<16x16x8xf32>
    %c2_65 = arith.constant 2 : index
    %c1_66 = arith.constant 1 : index
    %c0_67 = arith.constant 0 : index
    %69 = vector.load %arg10[%c2_65, %c1_66, %c0_67] : memref<18x18x8xf32, #tpu.memory_space<vmem>>, vector<16x16x8xf32>
    %c2_68 = arith.constant 2 : index
    %c1_69 = arith.constant 1 : index
    %c0_70 = arith.constant 0 : index
    %70 = vector.load %arg4[%c2_68, %c1_69, %c0_70] : memref<3x3x8xf32, #tpu.memory_space<vmem>>, vector<1x1x8xf32>
    %71 = vector.shape_cast %70 : vector<1x1x8xf32> to vector<8xf32>
    %72 = vector.shape_cast %71 : vector<8xf32> to vector<1x1x8xf32>
    %73 = vector.broadcast %72 : vector<1x1x8xf32> to vector<16x16x8xf32>
    %74 = arith.mulf %69, %73 : vector<16x16x8xf32>
    %75 = arith.addf %68, %74 : vector<16x16x8xf32>
    %c2_71 = arith.constant 2 : index
    %c2_72 = arith.constant 2 : index
    %c0_73 = arith.constant 0 : index
    %76 = vector.load %arg10[%c2_71, %c2_72, %c0_73] : memref<18x18x8xf32, #tpu.memory_space<vmem>>, vector<16x16x8xf32>
    %c2_74 = arith.constant 2 : index
    %c2_75 = arith.constant 2 : index
    %c0_76 = arith.constant 0 : index
    %77 = vector.load %arg4[%c2_74, %c2_75, %c0_76] : memref<3x3x8xf32, #tpu.memory_space<vmem>>, vector<1x1x8xf32>
    %78 = vector.shape_cast %77 : vector<1x1x8xf32> to vector<8xf32>
    %79 = vector.shape_cast %78 : vector<8xf32> to vector<1x1x8xf32>
    %80 = vector.broadcast %79 : vector<1x1x8xf32> to vector<16x16x8xf32>
    %81 = arith.mulf %76, %80 : vector<16x16x8xf32>
    %82 = arith.addf %75, %81 : vector<16x16x8xf32>
    %c0_77 = arith.constant 0 : index
    %c0_78 = arith.constant 0 : index
    %83 = vector.load %arg5[%c0_77, %c0_78] : memref<1x8xf32, #tpu.memory_space<vmem>>, vector<1x8xf32>
    %84 = vector.shape_cast %83 : vector<1x8xf32> to vector<8xf32>
    %85 = vector.shape_cast %84 : vector<8xf32> to vector<1x1x8xf32>
    %86 = vector.broadcast %85 : vector<1x1x8xf32> to vector<16x16x8xf32>
    %87 = arith.addf %82, %86 : vector<16x16x8xf32>
    %cst_79 = arith.constant 0.000000e+00 : f32
    %cst_80 = arith.constant 6.000000e+00 : f32
    %88 = vector.broadcast %cst_79 : f32 to vector<16x16x8xf32>
    %89 = arith.maximumf %88, %87 : vector<16x16x8xf32>
    %90 = vector.broadcast %cst_80 : f32 to vector<16x16x8xf32>
    %91 = arith.minimumf %90, %89 : vector<16x16x8xf32>
    %92 = vector.shape_cast %91 : vector<16x16x8xf32> to vector<256x8xf32>
    %93 = arith.truncf %92 : vector<256x8xf32> to vector<256x8xbf16>
    %c0_81 = arith.constant 0 : index
    %c0_82 = arith.constant 0 : index
    %94 = vector.load %arg6[%c0_81, %c0_82] : memref<4x8xbf16, #tpu.memory_space<vmem>>, vector<4x8xbf16>
    %cst_83 = arith.constant dense<0.000000e+00> : vector<4x256xf32>
    %95 = tpu.matmul %94, %93, %cst_83 {dimension_numbers = #tpu.dot_dimension_numbers<[1], [1], [0], [0], [0, 0, 1, 0], [], []>} : vector<4x8xbf16>, vector<256x8xbf16>, vector<4x256xf32> -> vector<4x256xf32>
    %c0_84 = arith.constant 0 : index
    %c0_85 = arith.constant 0 : index
    %96 = vector.load %arg7[%c0_84, %c0_85] : memref<4x4xbf16, #tpu.memory_space<vmem>>, vector<4x4xbf16>
    %cst_86 = arith.constant dense<0.000000e+00> : vector<4x256xf32>
    %97 = tpu.matmul %96, %1, %cst_86 {dimension_numbers = #tpu.dot_dimension_numbers<[1], [1], [0], [0], [0, 0, 1, 0], [], []>} : vector<4x4xbf16>, vector<256x4xbf16>, vector<4x256xf32> -> vector<4x256xf32>
    %98 = arith.addf %95, %97 : vector<4x256xf32>
    %c0_87 = arith.constant 0 : index
    %c0_88 = arith.constant 0 : index
    %99 = vector.load %arg8[%c0_87, %c0_88] : memref<4x1xf32, #tpu.memory_space<vmem>>, vector<4x1xf32>
    %100 = vector.broadcast %99 : vector<4x1xf32> to vector<4x256xf32>
    %101 = arith.addf %98, %100 : vector<4x256xf32>
    %102 = vector.shape_cast %101 : vector<4x256xf32> to vector<1x4x256xf32>
    %c0_89 = arith.constant 0 : index
    %c0_90 = arith.constant 0 : index
    %c0_91 = arith.constant 0 : index
    %103 = vector.load %arg9[%c0_89, %c0_90, %c0_91] : memref<1x4x256xf32, #tpu.memory_space<vmem>>, vector<1x4x256xf32>
    tpu.vector_store %arg9[%c0_89, %c0_90, %c0_91], %102 {strides = array<i32>} : memref<1x4x256xf32, #tpu.memory_space<vmem>>, vector<1x4x256xf32>,
    return
  }
  func.func @transform_0(%arg0: i32) -> (i32, i32, i32) {
    %c0_i32 = arith.constant 0 : i32
    %c0_i32_0 = arith.constant 0 : i32
    %c0_i32_1 = arith.constant 0 : i32
    return %arg0, %c0_i32, %c0_i32_0 : i32, i32, i32
  }
  func.func @transform_1(%arg0: i32) -> (i32, i32) {
    %c0_i32 = arith.constant 0 : i32
    %c0_i32_0 = arith.constant 0 : i32
    %c0_i32_1 = arith.constant 0 : i32
    return %c0_i32, %c0_i32_0 : i32, i32
  }
  func.func @transform_2(%arg0: i32) -> (i32, i32) {
    %c0_i32 = arith.constant 0 : i32
    %c0_i32_0 = arith.constant 0 : i32
    %c0_i32_1 = arith.constant 0 : i32
    return %c0_i32, %c0_i32_0 : i32, i32
  }
  func.func @transform_3(%arg0: i32) -> (i32, i32, i32) {
    %c0_i32 = arith.constant 0 : i32
    %c0_i32_0 = arith.constant 0 : i32
    %c0_i32_1 = arith.constant 0 : i32
    %c0_i32_2 = arith.constant 0 : i32
    return %c0_i32, %c0_i32_0, %c0_i32_1 : i32, i32, i32
  }
  func.func @transform_4(%arg0: i32) -> (i32, i32) {
    %c0_i32 = arith.constant 0 : i32
    %c0_i32_0 = arith.constant 0 : i32
    %c0_i32_1 = arith.constant 0 : i32
    return %c0_i32, %c0_i32_0 : i32, i32
  }
  func.func @transform_5(%arg0: i32) -> (i32, i32) {
    %c0_i32 = arith.constant 0 : i32
    %c0_i32_0 = arith.constant 0 : i32
    %c0_i32_1 = arith.constant 0 : i32
    return %c0_i32, %c0_i32_0 : i32, i32
  }
  func.func @transform_6(%arg0: i32) -> (i32, i32) {
    %c0_i32 = arith.constant 0 : i32
    %c0_i32_0 = arith.constant 0 : i32
    %c0_i32_1 = arith.constant 0 : i32
    return %c0_i32, %c0_i32_0 : i32, i32
  }
  func.func @transform_7(%arg0: i32) -> (i32, i32) {
    %c0_i32 = arith.constant 0 : i32
    %c0_i32_0 = arith.constant 0 : i32
    %c0_i32_1 = arith.constant 0 : i32
    return %c0_i32, %c0_i32_0 : i32, i32
  }
  func.func @transform_8(%arg0: i32) -> (i32, i32, i32) {
    %c0_i32 = arith.constant 0 : i32
    %c0_i32_0 = arith.constant 0 : i32
    %c0_i32_1 = arith.constant 0 : i32
    return %arg0, %c0_i32, %c0_i32_0 : i32, i32, i32
  }
}

</mosaic_0001>

<llo_original>
// kernel: tpu_custom_call.1
$region0: #{tpu_custom_call.1}
  #allocation0 [shape = 'u32[]', space=smem, size = 0x4, offset = 0x4, fixed_abs, tag = 'smem constant byte address 0x4 - core index']
  #allocation1 [shape = 'u32[72,128]{1,0:T(1,128)}', space=vmem, size = 0x9000, scoped, tag = 'internal scratch']
  #allocation2 [shape = 'f32[18,18,8]{2,1,0:T(8,128)}', space=vmem, size = 0x36000, scoped, tag = 'scratch operand']
  %s0 = inlined_call_operand.vmem [shape: bf16[2,256,4], index: 0, kind: input, shape index: {}]
  %s1 = inlined_call_operand.vmem [shape: bf16[4,8], index: 1, kind: input, shape index: {}]
  %s2 = inlined_call_operand.vmem [shape: f32[1,8], index: 2, kind: input, shape index: {}]
  %s3 = inlined_call_operand.vmem [shape: f32[3,3,8], index: 3, kind: input, shape index: {}]
  %s4 = inlined_call_operand.vmem [shape: f32[1,8], index: 4, kind: input, shape index: {}]
  %s5 = inlined_call_operand.vmem [shape: bf16[4,8], index: 5, kind: input, shape index: {}]
  %s6 = inlined_call_operand.vmem [shape: bf16[4,4], index: 6, kind: input, shape index: {}]
  %s7 = inlined_call_operand.vmem [shape: f32[4,1], index: 7, kind: input, shape index: {}]
  %s8 = inlined_call_operand.hbm [shape: f32[2,4,256], index: 8, kind: output, shape index: {}]
  %s9 = sld [smem:[#allocation0]]
  $region65: #{tpu_custom_call.1} parent=0
    _
  %s11 = ssub.s32 1, %s9
  %s12 = scalar_select 0, %s11, %s9
  $region1: #{tpu_custom_call.1} parent=0
    #allocation3 [shape = 'u8[8192]{0}', space=vmem, size = 0x2000, scoped, tag = 'output window, operand 0']
    #allocation4 [shape = 's32[2]{0}', space=sflag, size = 0x8, scoped, tag = 'scoped memory for tpu_custom_call.1']
    %13 = vsyncpa [#allocation4], 0
    %s14 = scalar_lea.sflag [#allocation4], 1
    %15 = vsyncpa %s14, 0
    loop: start=0, step=1, limit=4
    $region2: #{tpu_custom_call.1} parent=1 // loop_pre_header
      _
    $region3: #{tpu_custom_call.1} parent=1 // loop_header
      %s17 = sphi 0, %s21
      %p18 = scmp.ge.s32.totalorder %s17, 4
      %s27 = sphi 0, %s29
      %s30 = sphi 0, %s27
      %s31 = sphi 0, %s30
      %s47 = sphi 0, %s31
      %s51 = sphi 0, %s51
      %s53 = sphi 0, %s51
      %s54 = sphi 0, %s53
      %s68 = sphi 0, %s54
      %s72 = sphi 0, %s72
      %s74 = sphi 0, %s72
      %s75 = sphi 0, %s74
      %s89 = sphi 0, %s75
      %s93 = sphi 0, %s93
      %s95 = sphi 0, %s93
      %s96 = sphi 0, %s95
      %s110 = sphi 0, %s96
      %s114 = sphi 0, %s114
      %s116 = sphi 0, %s114
      %s117 = sphi 0, %s116
      %s131 = sphi 0, %s117
      %s135 = sphi 0, %s135
      %s137 = sphi 0, %s135
      %s138 = sphi 0, %s137
      %s152 = sphi 0, %s138
      %s156 = sphi 0, %s156
      %s158 = sphi 0, %s156
      %s159 = sphi 0, %s158
      %s173 = sphi 0, %s159
      %s177 = sphi 0, %s177
      %s179 = sphi 0, %s177
      %s180 = sphi 0, %s179
      %s194 = sphi 0, %s180
      %s200 = sphi 0, %s202
      %s203 = sphi 0, %s200
      %s204 = sphi 0, %s203
      %s220 = sphi 0, %s204
    $region4: #{tpu_custom_call.1} parent=1 // loop_header_branch
      %20 = sbr.rel (%p18) target = $region8
    $region5: #{tpu_custom_call.1} parent=1 // loop_body
      %s22 = ssub.s32 %s17, 1
      %s23 = ssub.s32 %s17, 2
      %s24 = sadd.s32 %s17, 1
      %s25 = ssub.s32 %s17, %s24
      %p26 = scmp.eq.s32.totalorder %s25, 0
      %s28 = sadd.s32 %s27, 1
      %s29 = scalar_select %p26, %s27, %s28
      %p32 = pneg %p26
      %p33 = scmp.eq.s32.totalorder %s17, 1
      %p34 = por %p32, %p33
      %p35 = scmp.ne.s32.totalorder %s27, %s30
      %p36 = scmp.eq.s32.totalorder %s17, 0
      %p37 = por %p35, %p36
      %p38 = scmp.ne.s32.totalorder %s27, %s30
      %p39 = scmp.eq.s32.totalorder %s22, 1
      %p40 = por %p38, %p39
      %p41 = scmp.ne.s32.totalorder %s30, %s31
      %p42 = scmp.eq.s32.totalorder %s22, 0
      %p43 = por %p41, %p42
      %p44 = scmp.ne.s32.totalorder %s30, %s31
      %p45 = scmp.eq.s32.totalorder %s23, 1
      %p46 = por %p44, %p45
      %p48 = scmp.ne.s32.totalorder %s31, %s47
      %p49 = scmp.eq.s32.totalorder %s23, 0
      %p50 = por %p48, %p49
      %s52 = sadd.s32 %s51, 1
      %p55 = scmp.eq.s32.totalorder %s17, 1
      %p56 = scmp.ne.s32.totalorder %s51, %s53
      %p57 = scmp.eq.s32.totalorder %s17, 0
      %p58 = por %p56, %p57
      %p59 = scmp.ne.s32.totalorder %s51, %s53
      %p60 = scmp.eq.s32.totalorder %s22, 1
      %p61 = por %p59, %p60
      %p62 = scmp.ne.s32.totalorder %s53, %s54
      %p63 = scmp.eq.s32.totalorder %s22, 0
      %p64 = por %p62, %p63
      %p65 = scmp.ne.s32.totalorder %s53, %s54
      %p66 = scmp.eq.s32.totalorder %s23, 1
      %p67 = por %p65, %p66
      %p69 = scmp.ne.s32.totalorder %s54, %s68
      %p70 = scmp.eq.s32.totalorder %s23, 0
      %p71 = por %p69, %p70
      %s73 = sadd.s32 %s72, 1
      %p76 = scmp.eq.s32.totalorder %s17, 1
      %p77 = scmp.ne.s32.totalorder %s72, %s74
      %p78 = scmp.eq.s32.totalorder %s17, 0
      %p79 = por %p77, %p78
      %p80 = scmp.ne.s32.totalorder %s72, %s74
      %p81 = scmp.eq.s32.totalorder %s22, 1
      %p82 = por %p80, %p81
      %p83 = scmp.ne.s32.totalorder %s74, %s75
      %p84 = scmp.eq.s32.totalorder %s22, 0
      %p85 = por %p83, %p84
      %p86 = scmp.ne.s32.totalorder %s74, %s75
      %p87 = scmp.eq.s32.totalorder %s23, 1
      %p88 = por %p86, %p87
      %p90 = scmp.ne.s32.totalorder %s75, %s89
      %p91 = scmp.eq.s32.totalorder %s23, 0
      %p92 = por %p90, %p91
      %s94 = sadd.s32 %s93, 1
      %p97 = scmp.eq.s32.totalorder %s17, 1
      %p98 = scmp.ne.s32.totalorder %s93, %s95
      %p99 = scmp.eq.s32.totalorder %s17, 0
      %p100 = por %p98, %p99
      %p101 = scmp.ne.s32.totalorder %s93, %s95
      %p102 = scmp.eq.s32.totalorder %s22, 1
      %p103 = por %p101, %p102
      %p104 = scmp.ne.s32.totalorder %s95, %s96
      %p105 = scmp.eq.s32.totalorder %s22, 0
      %p106 = por %p104, %p105
      %p107 = scmp.ne.s32.totalorder %s95, %s96
      %p108 = scmp.eq.s32.totalorder %s23, 1
      %p109 = por %p107, %p108
      %p111 = scmp.ne.s32.totalorder %s96, %s110
      %p112 = scmp.eq.s32.totalorder %s23, 0
      %p113 = por %p111, %p112
      %s115 = sadd.s32 %s114, 1
      %p118 = scmp.eq.s32.totalorder %s17, 1
      %p119 = scmp.ne.s32.totalorder %s114, %s116
      %p120 = scmp.eq.s32.totalorder %s17, 0
      %p121 = por %p119, %p120
      %p122 = scmp.ne.s32.totalorder %s114, %s116
      %p123 = scmp.eq.s32.totalorder %s22, 1
      %p124 = por %p122, %p123
      %p125 = scmp.ne.s32.totalorder %s116, %s117
      %p126 = scmp.eq.s32.totalorder %s22, 0
      %p127 = por %p125, %p126
      %p128 = scmp.ne.s32.totalorder %s116, %s117
      %p129 = scmp.eq.s32.totalorder %s23, 1
      %p130 = por %p128, %p129
      %p132 = scmp.ne.s32.totalorder %s117, %s131
      %p133 = scmp.eq.s32.totalorder %s23, 0
      %p134 = por %p132, %p133
      %s136 = sadd.s32 %s135, 1
      %p139 = scmp.eq.s32.totalorder %s17, 1
      %p140 = scmp.ne.s32.totalorder %s135, %s137
      %p141 = scmp.eq.s32.totalorder %s17, 0
      %p142 = por %p140, %p141
      %p143 = scmp.ne.s32.totalorder %s135, %s137
      %p144 = scmp.eq.s32.totalorder %s22, 1
      %p145 = por %p143, %p144
      %p146 = scmp.ne.s32.totalorder %s137, %s138
      %p147 = scmp.eq.s32.totalorder %s22, 0
      %p148 = por %p146, %p147
      %p149 = scmp.ne.s32.totalorder %s137, %s138
      %p150 = scmp.eq.s32.totalorder %s23, 1
      %p151 = por %p149, %p150
      %p153 = scmp.ne.s32.totalorder %s138, %s152
      %p154 = scmp.eq.s32.totalorder %s23, 0
      %p155 = por %p153, %p154
      %s157 = sadd.s32 %s156, 1
      %p160 = scmp.eq.s32.totalorder %s17, 1
      %p161 = scmp.ne.s32.totalorder %s156, %s158
      %p162 = scmp.eq.s32.totalorder %s17, 0
      %p163 = por %p161, %p162
      %p164 = scmp.ne.s32.totalorder %s156, %s158
      %p165 = scmp.eq.s32.totalorder %s22, 1
      %p166 = por %p164, %p165
      %p167 = scmp.ne.s32.totalorder %s158, %s159
      %p168 = scmp.eq.s32.totalorder %s22, 0
      %p169 = por %p167, %p168
      %p170 = scmp.ne.s32.totalorder %s158, %s159
      %p171 = scmp.eq.s32.totalorder %s23, 1
      %p172 = por %p170, %p171
      %p174 = scmp.ne.s32.totalorder %s159, %s173
      %p175 = scmp.eq.s32.totalorder %s23, 0
      %p176 = por %p174, %p175
      %s178 = sadd.s32 %s177, 1
      %p181 = scmp.eq.s32.totalorder %s17, 1
      %p182 = scmp.ne.s32.totalorder %s177, %s179
      %p183 = scmp.eq.s32.totalorder %s17, 0
      %p184 = por %p182, %p183
      %p185 = scmp.ne.s32.totalorder %s177, %s179
      %p186 = scmp.eq.s32.totalorder %s22, 1
      %p187 = por %p185, %p186
      %p188 = scmp.ne.s32.totalorder %s179, %s180
      %p189 = scmp.eq.s32.totalorder %s22, 0
      %p190 = por %p188, %p189
      %p191 = scmp.ne.s32.totalorder %s179, %s180
      %p192 = scmp.eq.s32.totalorder %s23, 1
      %p193 = por %p191, %p192
      %p195 = scmp.ne.s32.totalorder %s180, %s194
      %p196 = scmp.eq.s32.totalorder %s23, 0
      %p197 = por %p195, %p196
      %s198 = ssub.s32 %s17, %s24
      %p199 = scmp.eq.s32.totalorder %s198, 0
      %s201 = sadd.s32 %s200, 1
      %s202 = scalar_select %p199, %s200, %s201
      %p205 = pneg %p199
      %p206 = scmp.eq.s32.totalorder %s17, 1
      %p207 = por %p205, %p206
      %p208 = scmp.ne.s32.totalorder %s200, %s203
      %p209 = scmp.eq.s32.totalorder %s17, 0
      %p210 = por %p208, %p209
      %p211 = scmp.ne.s32.totalorder %s200, %s203
      %p212 = scmp.eq.s32.totalorder %s22, 1
      %p213 = por %p211, %p212
      %p214 = scmp.ne.s32.totalorder %s203, %s204
      %p215 = scmp.eq.s32.totalorder %s22, 0
      %p216 = por %p214, %p215
      %p217 = scmp.ne.s32.totalorder %s203, %s204
      %p218 = scmp.eq.s32.totalorder %s23, 1
      %p219 = por %p217, %p218
      %p221 = scmp.ne.s32.totalorder %s204, %s220
      %p222 = scmp.eq.s32.totalorder %s23, 0
      %p223 = por %p221, %p222
      %p224 = scmp.le.s32.totalorder 1, %s17
      %p225 = scmp.lt.s32.totalorder %s17, 3
      %p226 = pnand %p224, %p225
      %p227 = pneg %p226
      // Predicated region
      $region9: #{tpu_custom_call.1} parent=5 // pred_check
        _
      $region10: #{tpu_custom_call.1} parent=5 // pred_check_branch
        %229 = sbr.rel (%p226) target = $region12
      $region11: #{tpu_custom_call.1} parent=5 // pred_region
        %s230 = ssub.s32 %s17, 1
        // Predicated region
        $region13: #{tpu_custom_call.1} parent=11 // pred_check
          %p231 = pneg %p64
        $region14: #{tpu_custom_call.1} parent=11 // pred_check_branch
          %233 = sbr.rel (%p231) target = $region16
        $region15: #{tpu_custom_call.1} parent=11 // pred_region
          _
        $region16: #{tpu_custom_call.1} parent=11 // pred_fallthru
          _
        // Predicated region
        $region17: #{tpu_custom_call.1} parent=11 // pred_check
          %p234 = pneg %p85
        $region18: #{tpu_custom_call.1} parent=11 // pred_check_branch
          %236 = sbr.rel (%p234) target = $region20
        $region19: #{tpu_custom_call.1} parent=11 // pred_region
          _
        $region20: #{tpu_custom_call.1} parent=11 // pred_fallthru
          _
        // Predicated region
        $region21: #{tpu_custom_call.1} parent=11 // pred_check
          %p237 = pneg %p106
        $region22: #{tpu_custom_call.1} parent=11 // pred_check_branch
          %239 = sbr.rel (%p237) target = $region24
        $region23: #{tpu_custom_call.1} parent=11 // pred_region
          _
        $region24: #{tpu_custom_call.1} parent=11 // pred_fallthru
          _
        // Predicated region
        $region25: #{tpu_custom_call.1} parent=11 // pred_check
          %p240 = pneg %p127
        $region26: #{tpu_custom_call.1} parent=11 // pred_check_branch
          %242 = sbr.rel (%p240) target = $region28
        $region27: #{tpu_custom_call.1} parent=11 // pred_region
          _
        $region28: #{tpu_custom_call.1} parent=11 // pred_fallthru
          _
        // Predicated region
        $region29: #{tpu_custom_call.1} parent=11 // pred_check
          %p243 = pneg %p148
        $region30: #{tpu_custom_call.1} parent=11 // pred_check_branch
          %245 = sbr.rel (%p243) target = $region32
        $region31: #{tpu_custom_call.1} parent=11 // pred_region
          _
        $region32: #{tpu_custom_call.1} parent=11 // pred_fallthru
          _
        // Predicated region
        $region33: #{tpu_custom_call.1} parent=11 // pred_check
          %p246 = pneg %p169
        $region34: #{tpu_custom_call.1} parent=11 // pred_check_branch
          %248 = sbr.rel (%p246) target = $region36
        $region35: #{tpu_custom_call.1} parent=11 // pred_region
          _
        $region36: #{tpu_custom_call.1} parent=11 // pred_fallthru
          _
        // Predicated region
        $region37: #{tpu_custom_call.1} parent=11 // pred_check
          %p249 = pneg %p190
        $region38: #{tpu_custom_call.1} parent=11 // pred_check_branch
          %251 = sbr.rel (%p249) target = $region40
        $region39: #{tpu_custom_call.1} parent=11 // pred_region
          _
        $region40: #{tpu_custom_call.1} parent=11 // pred_fallthru
          _
      $region12: #{tpu_custom_call.1} parent=5 // pred_fallthru
        _
      %p252 = scmp.lt.s32.totalorder %s17, 2
      // Predicated region
      $region41: #{tpu_custom_call.1} parent=5 // pred_check
        %p253 = pneg %p252
      $region42: #{tpu_custom_call.1} parent=5 // pred_check_branch
        %255 = sbr.rel (%p253) target = $region44
      $region43: #{tpu_custom_call.1} parent=5 // pred_region
        // Predicated region
        $region45: #{tpu_custom_call.1} parent=43 // pred_check
          %p256 = pneg %p37
        $region46: #{tpu_custom_call.1} parent=43 // pred_check_branch
          %258 = sbr.rel (%p256) target = $region48
        $region47: #{tpu_custom_call.1} parent=43 // pred_region
          %p259 = scmp.lt.s32.totalorder %s17, 1
          %s260 = scalar_select %p259, %s17, 1
          %s261 = smul.addr %s260, 32
          %s262 = smul.addr %s261, 4
          %s263 = scalar_lea.vmem %s0, %s262
        $region48: #{tpu_custom_call.1} parent=43 // pred_fallthru
          _
      $region44: #{tpu_custom_call.1} parent=5 // pred_fallthru
        _
      %p264 = scmp.le.s32.totalorder 1, %s17
      %p265 = scmp.lt.s32.totalorder %s17, 3
      %p266 = pnand %p264, %p265
      %p267 = pneg %p266
      // Predicated region
      $region49: #{tpu_custom_call.1} parent=5 // pred_check
        _
      $region50: #{tpu_custom_call.1} parent=5 // pred_check_branch
        %269 = sbr.rel (%p266) target = $region52
      $region51: #{tpu_custom_call.1} parent=5 // pred_region
        %s270 = ssub.s32 %s17, 1
        %p271 = scmp.lt.s32.totalorder %s22, 1
        %s272 = scalar_select %p271, %s22, 1
        %s273 = smul.addr %s272, 32
        %s274 = smul.addr %s273, 4
        %s275 = scalar_lea.vmem %s0, %s274
        %p276 = pneg %p43
        %p277 = pneg %p40
        %p278 = pneg %p64
        %p279 = pneg %p61
        %p280 = pneg %p85
        %p281 = pneg %p82
        %p282 = pneg %p106
        %p283 = pneg %p103
        %p284 = pneg %p127
        %p285 = pneg %p124
        %p286 = pneg %p148
        %p287 = pneg %p145
        %p288 = pneg %p169
        %p289 = pneg %p166
        %p290 = pneg %p190
        %p291 = pneg %p187
        %p292 = pneg %p216
        %p293 = pneg %p213
        %s294 = sand.u32 %s203, 1
        %s295 = scalar_lea.sflag [#allocation4], %s294
        %s296 = sand.u32 %s203, 1
        %s297 = smul.addr %s296, 8
        %s298 = scalar_lea.vmem [#allocation3], %s297
        %p299 = scmp.lt.s32.totalorder %s22, 1
        %s300 = scalar_select %p299, %s22, 1
        %s301 = smul.addr %s300, 32
        %s302 = smul.addr %s301, 4
        %s303 = scalar_lea.vmem %s0, %s302
        %v305 = vld [vmem:[%s303] sm:$0xf]
        %v306 = vld [vmem:[%s303 + $0x4] sm:$0xf]
        %v307 = vld [vmem:[%s303 + $0x8] sm:$0xf]
        %v308 = vld [vmem:[%s303 + $0xc] sm:$0xf]
        %v309 = vld [vmem:[%s303 + $0x10] sm:$0xf]
        %v310 = vld [vmem:[%s303 + $0x14] sm:$0xf]
        %v311 = vld [vmem:[%s303 + $0x18] sm:$0xf]
        %v312 = vld [vmem:[%s303 + $0x1c] sm:$0xf]
        %v313 = vld [vmem:[%s303 + $0x20] sm:$0xf]
        %v314 = vld [vmem:[%s303 + $0x24] sm:$0xf]
        %v315 = vld [vmem:[%s303 + $0x28] sm:$0xf]
        %v316 = vld [vmem:[%s303 + $0x2c] sm:$0xf]
        %v317 = vld [vmem:[%s303 + $0x30] sm:$0xf]
        %v318 = vld [vmem:[%s303 + $0x34] sm:$0xf]
        %v319 = vld [vmem:[%s303 + $0x38] sm:$0xf]
        %v320 = vld [vmem:[%s303 + $0x3c] sm:$0xf]
        %v321 = vld [vmem:[%s303 + $0x40] sm:$0xf]
        %v322 = vld [vmem:[%s303 + $0x44] sm:$0xf]
        %v323 = vld [vmem:[%s303 + $0x48] sm:$0xf]
        %v324 = vld [vmem:[%s303 + $0x4c] sm:$0xf]
        %v325 = vld [vmem:[%s303 + $0x50] sm:$0xf]
        %v326 = vld [vmem:[%s303 + $0x54] sm:$0xf]
        %v327 = vld [vmem:[%s303 + $0x58] sm:$0xf]
        %v328 = vld [vmem:[%s303 + $0x5c] sm:$0xf]
        %v329 = vld [vmem:[%s303 + $0x60] sm:$0xf]
        %v330 = vld [vmem:[%s303 + $0x64] sm:$0xf]
        %v331 = vld [vmem:[%s303 + $0x68] sm:$0xf]
        %v332 = vld [vmem:[%s303 + $0x6c] sm:$0xf]
        %v333 = vld [vmem:[%s303 + $0x70] sm:$0xf]
        %v334 = vld [vmem:[%s303 + $0x74] sm:$0xf]
        %v335 = vld [vmem:[%s303 + $0x78] sm:$0xf]
        %v336 = vld [vmem:[%s303 + $0x7c] sm:$0xf]
        %v337 = vld [vmem:[%s1] sm:$0x3]
        %v338 = vld [vmem:[%s2] sm:$0x1]
        %v340 = vperm.slane %v338, 0
        %v374 = vunpack.c.l.b16 %v305
        %v375 = vunpack.c.l.b16 %v306
        %v376 = vunpack.c.l.b16 %v307
        %v377 = vunpack.c.l.b16 %v308
        %v378 = vunpack.c.l.b16 %v309
        %v379 = vunpack.c.l.b16 %v310
        %v380 = vunpack.c.l.b16 %v311
        %v381 = vunpack.c.l.b16 %v312
        %v382 = vunpack.c.l.b16 %v313
        %v383 = vunpack.c.l.b16 %v314
        %v384 = vunpack.c.l.b16 %v315
        %v385 = vunpack.c.l.b16 %v316
        %v386 = vunpack.c.l.b16 %v317
        %v387 = vunpack.c.l.b16 %v318
        %v388 = vunpack.c.l.b16 %v319
        %v389 = vunpack.c.l.b16 %v320
        %v390 = vunpack.c.l.b16 %v321
        %v391 = vunpack.c.l.b16 %v322
        %v392 = vunpack.c.l.b16 %v323
        %v393 = vunpack.c.l.b16 %v324
        %v394 = vunpack.c.l.b16 %v325
        %v395 = vunpack.c.l.b16 %v326
        %v396 = vunpack.c.l.b16 %v327
        %v397 = vunpack.c.l.b16 %v328
        %v398 = vunpack.c.l.b16 %v329
        %v399 = vunpack.c.l.b16 %v330
        %v400 = vunpack.c.l.b16 %v331
        %v401 = vunpack.c.l.b16 %v332
        %v402 = vunpack.c.l.b16 %v333
        %v403 = vunpack.c.l.b16 %v334
        %v404 = vunpack.c.l.b16 %v335
        %v405 = vunpack.c.l.b16 %v336
        %v406 = vpack.c.b16 %v375, %v374
        %v407 = vpack.c.b16 %v377, %v376
        %v408 = vpack.c.b16 %v379, %v378
        %v409 = vpack.c.b16 %v381, %v380
        %v410 = vpack.c.b16 %v383, %v382
        %v411 = vpack.c.b16 %v385, %v384
        %v412 = vpack.c.b16 %v387, %v386
        %v413 = vpack.c.b16 %v389, %v388
        %v414 = vpack.c.b16 %v391, %v390
        %v415 = vpack.c.b16 %v393, %v392
        %v416 = vpack.c.b16 %v395, %v394
        %v417 = vpack.c.b16 %v397, %v396
        %v418 = vpack.c.b16 %v399, %v398
        %v419 = vpack.c.b16 %v401, %v400
        %v420 = vpack.c.b16 %v403, %v402
        %v421 = vpack.c.b16 %v405, %v404
        %vm422 = vcmask 31744
        %v424 = vsel %vm422, %v406, 0
        %v427 = vsel %vm422, %v407, 0
        %v430 = vsel %vm422, %v408, 0
        %v433 = vsel %vm422, %v409, 0
        %v436 = vsel %vm422, %v410, 0
        %v439 = vsel %vm422, %v411, 0
        %v442 = vsel %vm422, %v412, 0
        %v445 = vsel %vm422, %v413, 0
        %v448 = vsel %vm422, %v414, 0
        %v451 = vsel %vm422, %v415, 0
        %v454 = vsel %vm422, %v416, 0
        %v457 = vsel %vm422, %v417, 0
        %v460 = vsel %vm422, %v418, 0
        %v463 = vsel %vm422, %v419, 0
        %v466 = vsel %vm422, %v420, 0
        %v469 = vsel %vm422, %v421, 0
        %vm471 = vcmask 1041408
        %v473 = vsel %vm471, %v337, 0
        %475 = vmatpush.bf16.msra.mxu0 0
        %476 = vmatpush.bf16.msra.mxu0 0
        %477 = vmatpush.bf16.msra.mxu0 0
        %478 = vmatpush.bf16.msra.mxu0 0
        %479 = vmatpush.bf16.msra.mxu0 0
        %480 = vmatpush.bf16.msra.mxu0 0
        %481 = vmatpush.bf16.msra.mxu0 0
        %482 = vmatpush.bf16.msra.mxu0 %v473
        %483 = vmatmul.bf16.gmra.mxu0 %v424
        %v484 = vpop.f32.mrf.mxu0
        %v485 = vadd.f32 %v340, %v484
        %v486 = vpop.f32.mrf.mxu0
        %v487 = vadd.f32 %v340, %v486
        %488 = vmatmul.bf16.gmra.mxu0 %v427
        %v489 = vpop.f32.mrf.mxu0
        %v490 = vadd.f32 %v340, %v489
        %v491 = vpop.f32.mrf.mxu0
        %v492 = vadd.f32 %v340, %v491
        %493 = vmatmul.bf16.gmra.mxu0 %v430
        %v494 = vpop.f32.mrf.mxu0
        %v495 = vadd.f32 %v340, %v494
        %v496 = vpop.f32.mrf.mxu0
        %v497 = vadd.f32 %v340, %v496
        %498 = vmatmul.bf16.gmra.mxu0 %v433
        %v499 = vpop.f32.mrf.mxu0
        %v500 = vadd.f32 %v340, %v499
        %v501 = vpop.f32.mrf.mxu0
        %v502 = vadd.f32 %v340, %v501
        %503 = vmatmul.bf16.gmra.mxu0 %v436
        %v504 = vpop.f32.mrf.mxu0
        %v505 = vadd.f32 %v340, %v504
        %v506 = vpop.f32.mrf.mxu0
        %v507 = vadd.f32 %v340, %v506
        %508 = vmatmul.bf16.gmra.mxu0 %v439
        %v509 = vpop.f32.mrf.mxu0
        %v510 = vadd.f32 %v340, %v509
        %v511 = vpop.f32.mrf.mxu0
        %v512 = vadd.f32 %v340, %v511
        %513 = vmatmul.bf16.gmra.mxu0 %v442
        %v514 = vpop.f32.mrf.mxu0
        %v515 = vadd.f32 %v340, %v514
        %v516 = vpop.f32.mrf.mxu0
        %v517 = vadd.f32 %v340, %v516
        %518 = vmatmul.bf16.gmra.mxu0 %v445
        %v519 = vpop.f32.mrf.mxu0
        %v520 = vadd.f32 %v340, %v519
        %v521 = vpop.f32.mrf.mxu0
        %v522 = vadd.f32 %v340, %v521
        %523 = vmatmul.bf16.gmra.mxu0 %v448
        %v524 = vpop.f32.mrf.mxu0
        %v525 = vadd.f32 %v340, %v524
        %v526 = vpop.f32.mrf.mxu0
        %v527 = vadd.f32 %v340, %v526
        %528 = vmatmul.bf16.gmra.mxu0 %v451
        %v529 = vpop.f32.mrf.mxu0
        %v530 = vadd.f32 %v340, %v529
        %v531 = vpop.f32.mrf.mxu0
        %v532 = vadd.f32 %v340, %v531
        %533 = vmatmul.bf16.gmra.mxu0 %v454
        %v534 = vpop.f32.mrf.mxu0
        %v535 = vadd.f32 %v340, %v534
        %v536 = vpop.f32.mrf.mxu0
        %v537 = vadd.f32 %v340, %v536
        %538 = vmatmul.bf16.gmra.mxu0 %v457
        %v539 = vpop.f32.mrf.mxu0
        %v540 = vadd.f32 %v340, %v539
        %v541 = vpop.f32.mrf.mxu0
        %v542 = vadd.f32 %v340, %v541
        %543 = vmatmul.bf16.gmra.mxu0 %v460
        %v544 = vpop.f32.mrf.mxu0
        %v545 = vadd.f32 %v340, %v544
        %v546 = vpop.f32.mrf.mxu0
        %v547 = vadd.f32 %v340, %v546
        %548 = vmatmul.bf16.gmra.mxu0 %v463
        %v549 = vpop.f32.mrf.mxu0
        %v550 = vadd.f32 %v340, %v549
        %v551 = vpop.f32.mrf.mxu0
        %v552 = vadd.f32 %v340, %v551
        %553 = vmatmul.bf16.gmra.mxu0 %v466
        %v554 = vpop.f32.mrf.mxu0
        %v555 = vadd.f32 %v340, %v554
        %v556 = vpop.f32.mrf.mxu0
        %v557 = vadd.f32 %v340, %v556
        %558 = vmatmul.bf16.gmra.mxu0 %v469
        %v559 = vpop.f32.mrf.mxu0
        %v560 = vadd.f32 %v340, %v559
        %v561 = vpop.f32.mrf.mxu0
        %v562 = vadd.f32 %v340, %v561
        %563 = vdwg.mxu0
        %v564 = vmax.f32 %v485, 0.0
        %v565 = vmax.f32 %v487, 0.0
        %v566 = vmax.f32 %v490, 0.0
        %v567 = vmax.f32 %v492, 0.0
        %v568 = vmax.f32 %v495, 0.0
        %v569 = vmax.f32 %v497, 0.0
        %v570 = vmax.f32 %v500, 0.0
        %v571 = vmax.f32 %v502, 0.0
        %v572 = vmax.f32 %v505, 0.0
        %v573 = vmax.f32 %v507, 0.0
        %v574 = vmax.f32 %v510, 0.0
        %v575 = vmax.f32 %v512, 0.0
        %v576 = vmax.f32 %v515, 0.0
        %v577 = vmax.f32 %v517, 0.0
        %v578 = vmax.f32 %v520, 0.0
        %v579 = vmax.f32 %v522, 0.0
        %v580 = vmax.f32 %v525, 0.0
        %v581 = vmax.f32 %v527, 0.0
        %v582 = vmax.f32 %v530, 0.0
        %v583 = vmax.f32 %v532, 0.0
        %v584 = vmax.f32 %v535, 0.0
        %v585 = vmax.f32 %v537, 0.0
        %v586 = vmax.f32 %v540, 0.0
        %v587 = vmax.f32 %v542, 0.0
        %v588 = vmax.f32 %v545, 0.0
        %v589 = vmax.f32 %v547, 0.0
        %v590 = vmax.f32 %v550, 0.0
        %v591 = vmax.f32 %v552, 0.0
        %v592 = vmax.f32 %v555, 0.0
        %v593 = vmax.f32 %v557, 0.0
        %v594 = vmax.f32 %v560, 0.0
        %v595 = vmax.f32 %v562, 0.0
        %v596 = vmin.f32 %v564, 6.0
        %v597 = vmin.f32 %v565, 6.0
        %v598 = vmin.f32 %v566, 6.0
        %v599 = vmin.f32 %v567, 6.0
        %v600 = vmin.f32 %v568, 6.0
        %v601 = vmin.f32 %v569, 6.0
        %v602 = vmin.f32 %v570, 6.0
        %v603 = vmin.f32 %v571, 6.0
        %v604 = vmin.f32 %v572, 6.0
        %v605 = vmin.f32 %v573, 6.0
        %v606 = vmin.f32 %v574, 6.0
        %v607 = vmin.f32 %v575, 6.0
        %v608 = vmin.f32 %v576, 6.0
        %v609 = vmin.f32 %v577, 6.0
        %v610 = vmin.f32 %v578, 6.0
        %v611 = vmin.f32 %v579, 6.0
        %v612 = vmin.f32 %v580, 6.0
        %v613 = vmin.f32 %v581, 6.0
        %v614 = vmin.f32 %v582, 6.0
        %v615 = vmin.f32 %v583, 6.0
        %v616 = vmin.f32 %v584, 6.0
        %v617 = vmin.f32 %v585, 6.0
        %v618 = vmin.f32 %v586, 6.0
        %v619 = vmin.f32 %v587, 6.0
        %v620 = vmin.f32 %v588, 6.0
        %v621 = vmin.f32 %v589, 6.0
        %v622 = vmin.f32 %v590, 6.0
        %v623 = vmin.f32 %v591, 6.0
        %v624 = vmin.f32 %v592, 6.0
        %v625 = vmin.f32 %v593, 6.0
        %v626 = vmin.f32 %v594, 6.0
        %v627 = vmin.f32 %v595, 6.0
        %vm628 = vcmask 64512
        %629 = vst.msk [vmem:[#allocation2] sm:$0xff] %vm628, 0.0
        %630 = vst.msk [vmem:[#allocation2 + $0x8] sm:$0xff] %vm628, 0.0
        %vm631 = vcmask 58368
        %632 = vst.msk [vmem:[#allocation2 + $0x10] sm:$0x3] %vm631, 0.0
        %s633 = scalar_lea.vmem [#allocation2], 408
        %634 = vst.msk [vmem:[%s633] sm:$0xff] %vm628, 0.0
        %635 = vst.msk [vmem:[%s633 + $0x8] sm:$0xff] %vm628, 0.0
        %636 = vst.msk [vmem:[%s633 + $0x10] sm:$0x3] %vm631, 0.0
        %s637 = scalar_lea.vmem [#allocation2], 24
        %vm638 = vcmask 57344
        %639 = vst.msk [vmem:[%s637] sm:$0x1] %vm638, 0.0
        %640 = vst.msk [vmem:[%s637 + $0x18] sm:$0x1] %vm638, 0.0
        %641 = vst.msk [vmem:[%s637 + $0x30] sm:$0x1] %vm638, 0.0
        %642 = vst.msk [vmem:[%s637 + $0x48] sm:$0x1] %vm638, 0.0
        %643 = vst.msk [vmem:[%s637 + $0x60] sm:$0x1] %vm638, 0.0
        %644 = vst.msk [vmem:[%s637 + $0x78] sm:$0x1] %vm638, 0.0
        %645 = vst.msk [vmem:[%s637 + $0x90] sm:$0x1] %vm638, 0.0
        %646 = vst.msk [vmem:[%s637 + $0xa8] sm:$0x1] %vm638, 0.0
        %647 = vst.msk [vmem:[%s637 + $0xc0] sm:$0x1] %vm638, 0.0
        %648 = vst.msk [vmem:[%s637 + $0xd8] sm:$0x1] %vm638, 0.0
        %649 = vst.msk [vmem:[%s637 + $0xf0] sm:$0x1] %vm638, 0.0
        %650 = vst.msk [vmem:[%s637 + $0x108] sm:$0x1] %vm638, 0.0
        %651 = vst.msk [vmem:[%s637 + $0x120] sm:$0x1] %vm638, 0.0
        %652 = vst.msk [vmem:[%s637 + $0x138] sm:$0x1] %vm638, 0.0
        %653 = vst.msk [vmem:[%s637 + $0x150] sm:$0x1] %vm638, 0.0
        %654 = vst.msk [vmem:[%s637 + $0x168] sm:$0x1] %vm638, 0.0
        %655 = vst.msk [vmem:[%s637 + $0x11] sm:$0x1] %vm638, 0.0
        %656 = vst.msk [vmem:[%s637 + $0x29] sm:$0x1] %vm638, 0.0
        %657 = vst.msk [vmem:[%s637 + $0x41] sm:$0x1] %vm638, 0.0
        %658 = vst.msk [vmem:[%s637 + $0x59] sm:$0x1] %vm638, 0.0
        %659 = vst.msk [vmem:[%s637 + $0x71] sm:$0x1] %vm638, 0.0
        %660 = vst.msk [vmem:[%s637 + $0x89] sm:$0x1] %vm638, 0.0
        %661 = vst.msk [vmem:[%s637 + $0xa1] sm:$0x1] %vm638, 0.0
        %662 = vst.msk [vmem:[%s637 + $0xb9] sm:$0x1] %vm638, 0.0
        %663 = vst.msk [vmem:[%s637 + $0xd1] sm:$0x1] %vm638, 0.0
        %664 = vst.msk [vmem:[%s637 + $0xe9] sm:$0x1] %vm638, 0.0
        %665 = vst.msk [vmem:[%s637 + $0x101] sm:$0x1] %vm638, 0.0
        %666 = vst.msk [vmem:[%s637 + $0x119] sm:$0x1] %vm638, 0.0
        %667 = vst.msk [vmem:[%s637 + $0x131] sm:$0x1] %vm638, 0.0
        %668 = vst.msk [vmem:[%s637 + $0x149] sm:$0x1] %vm638, 0.0
        %669 = vst.msk [vmem:[%s637 + $0x161] sm:$0x1] %vm638, 0.0
        %670 = vst.msk [vmem:[%s637 + $0x179] sm:$0x1] %vm638, 0.0
        %671 = vst.msk [vmem:[%s637 + $0x1] sm:$0xff] %vm628, %v596
        %672 = vst.msk [vmem:[%s637 + $0x9] sm:$0xff] %vm628, %v597
        %673 = vst.msk [vmem:[%s637 + $0x19] sm:$0xff] %vm628, %v598
        %674 = vst.msk [vmem:[%s637 + $0x21] sm:$0xff] %vm628, %v599
        %675 = vst.msk [vmem:[%s637 + $0x31] sm:$0xff] %vm628, %v600
        %676 = vst.msk [vmem:[%s637 + $0x39] sm:$0xff] %vm628, %v601
        %677 = vst.msk [vmem:[%s637 + $0x49] sm:$0xff] %vm628, %v602
        %678 = vst.msk [vmem:[%s637 + $0x51] sm:$0xff] %vm628, %v603
        %679 = vst.msk [vmem:[%s637 + $0x61] sm:$0xff] %vm628, %v604
        %680 = vst.msk [vmem:[%s637 + $0x69] sm:$0xff] %vm628, %v605
        %681 = vst.msk [vmem:[%s637 + $0x79] sm:$0xff] %vm628, %v606
        %682 = vst.msk [vmem:[%s637 + $0x81] sm:$0xff] %vm628, %v607
        %683 = vst.msk [vmem:[%s637 + $0x91] sm:$0xff] %vm628, %v608
        %684 = vst.msk [vmem:[%s637 + $0x99] sm:$0xff] %vm628, %v609
        %685 = vst.msk [vmem:[%s637 + $0xa9] sm:$0xff] %vm628, %v610
        %686 = vst.msk [vmem:[%s637 + $0xb1] sm:$0xff] %vm628, %v611
        %687 = vst.msk [vmem:[%s637 + $0xc1] sm:$0xff] %vm628, %v612
        %688 = vst.msk [vmem:[%s637 + $0xc9] sm:$0xff] %vm628, %v613
        %689 = vst.msk [vmem:[%s637 + $0xd9] sm:$0xff] %vm628, %v614
        %690 = vst.msk [vmem:[%s637 + $0xe1] sm:$0xff] %vm628, %v615
        %691 = vst.msk [vmem:[%s637 + $0xf1] sm:$0xff] %vm628, %v616
        %692 = vst.msk [vmem:[%s637 + $0xf9] sm:$0xff] %vm628, %v617
        %693 = vst.msk [vmem:[%s637 + $0x109] sm:$0xff] %vm628, %v618
        %694 = vst.msk [vmem:[%s637 + $0x111] sm:$0xff] %vm628, %v619
        %695 = vst.msk [vmem:[%s637 + $0x121] sm:$0xff] %vm628, %v620
        %696 = vst.msk [vmem:[%s637 + $0x129] sm:$0xff] %vm628, %v621
        %697 = vst.msk [vmem:[%s637 + $0x139] sm:$0xff] %vm628, %v622
        %698 = vst.msk [vmem:[%s637 + $0x141] sm:$0xff] %vm628, %v623
        %699 = vst.msk [vmem:[%s637 + $0x151] sm:$0xff] %vm628, %v624
        %700 = vst.msk [vmem:[%s637 + $0x159] sm:$0xff] %vm628, %v625
        %701 = vst.msk [vmem:[%s637 + $0x169] sm:$0xff] %vm628, %v626
        %702 = vst.msk [vmem:[%s637 + $0x171] sm:$0xff] %vm628, %v627
        %v703 = vld [vmem:[#allocation2] sm:$0xff]
        %v704 = vld [vmem:[#allocation2 + $0x8] sm:$0xff]
        %v705 = vld [vmem:[#allocation2 + $0x18] sm:$0xff]
        %v706 = vld [vmem:[#allocation2 + $0x20] sm:$0xff]
        %v707 = vld [vmem:[#allocation2 + $0x30] sm:$0xff]
        %v708 = vld [vmem:[#allocation2 + $0x38] sm:$0xff]
        %v709 = vld [vmem:[#allocation2 + $0x48] sm:$0xff]
        %v710 = vld [vmem:[#allocation2 + $0x50] sm:$0xff]
        %v711 = vld [vmem:[#allocation2 + $0x60] sm:$0xff]
        %v712 = vld [vmem:[#allocation2 + $0x68] sm:$0xff]
        %v713 = vld [vmem:[#allocation2 + $0x78] sm:$0xff]
        %v714 = vld [vmem:[#allocation2 + $0x80] sm:$0xff]
        %v715 = vld [vmem:[#allocation2 + $0x90] sm:$0xff]
        %v716 = vld [vmem:[#allocation2 + $0x98] sm:$0xff]
        %v717 = vld [vmem:[#allocation2 + $0xa8] sm:$0xff]
        %v718 = vld [vmem:[#allocation2 + $0xb0] sm:$0xff]
        %v719 = vld [vmem:[#allocation2 + $0xc0] sm:$0xff]
        %v720 = vld [vmem:[#allocation2 + $0xc8] sm:$0xff]
        %v721 = vld [vmem:[#allocation2 + $0xd8] sm:$0xff]
        %v722 = vld [vmem:[#allocation2 + $0xe0] sm:$0xff]
        %v723 = vld [vmem:[#allocation2 + $0xf0] sm:$0xff]
        %v724 = vld [vmem:[#allocation2 + $0xf8] sm:$0xff]
        %v725 = vld [vmem:[#allocation2 + $0x108] sm:$0xff]
        %v726 = vld [vmem:[#allocation2 + $0x110] sm:$0xff]
        %v727 = vld [vmem:[#allocation2 + $0x120] sm:$0xff]
        %v728 = vld [vmem:[#allocation2 + $0x128] sm:$0xff]
        %v729 = vld [vmem:[#allocation2 + $0x138] sm:$0xff]
        %v730 = vld [vmem:[#allocation2 + $0x140] sm:$0xff]
        %v731 = vld [vmem:[#allocation2 + $0x150] sm:$0xff]
        %v732 = vld [vmem:[#allocation2 + $0x158] sm:$0xff]
        %v733 = vld [vmem:[#allocation2 + $0x168] sm:$0xff]
        %v734 = vld [vmem:[#allocation2 + $0x170] sm:$0xff]
        %v735 = vld [vmem:[%s3] sm:$0x1]
        %v736 = vperm.slane %v735, 0
        %v737 = vmul.f32 %v703, %v736
        %v738 = vmul.f32 %v704, %v736
        %v739 = vmul.f32 %v705, %v736
        %v740 = vmul.f32 %v706, %v736
        %v741 = vmul.f32 %v707, %v736
        %v742 = vmul.f32 %v708, %v736
        %v743 = vmul.f32 %v709, %v736
        %v744 = vmul.f32 %v710, %v736
        %v745 = vmul.f32 %v711, %v736
        %v746 = vmul.f32 %v712, %v736
        %v747 = vmul.f32 %v713, %v736
        %v748 = vmul.f32 %v714, %v736
        %v749 = vmul.f32 %v715, %v736
        %v750 = vmul.f32 %v716, %v736
        %v751 = vmul.f32 %v717, %v736
        %v752 = vmul.f32 %v718, %v736
        %v753 = vmul.f32 %v719, %v736
        %v754 = vmul.f32 %v720, %v736
        %v755 = vmul.f32 %v721, %v736
        %v756 = vmul.f32 %v722, %v736
        %v757 = vmul.f32 %v723, %v736
        %v758 = vmul.f32 %v724, %v736
        %v759 = vmul.f32 %v725, %v736
        %v760 = vmul.f32 %v726, %v736
        %v761 = vmul.f32 %v727, %v736
        %v762 = vmul.f32 %v728, %v736
        %v763 = vmul.f32 %v729, %v736
        %v764 = vmul.f32 %v730, %v736
        %v765 = vmul.f32 %v731, %v736
        %v766 = vmul.f32 %v732, %v736
        %v767 = vmul.f32 %v733, %v736
        %v768 = vmul.f32 %v734, %v736
        %v769 = vadd.f32 %v737, 0.0
        %v770 = vadd.f32 %v738, 0.0
        %v771 = vadd.f32 %v739, 0.0
        %v772 = vadd.f32 %v740, 0.0
        %v773 = vadd.f32 %v741, 0.0
        %v774 = vadd.f32 %v742, 0.0
        %v775 = vadd.f32 %v743, 0.0
        %v776 = vadd.f32 %v744, 0.0
        %v777 = vadd.f32 %v745, 0.0
        %v778 = vadd.f32 %v746, 0.0
        %v779 = vadd.f32 %v747, 0.0
        %v780 = vadd.f32 %v748, 0.0
        %v781 = vadd.f32 %v749, 0.0
        %v782 = vadd.f32 %v750, 0.0
        %v783 = vadd.f32 %v751, 0.0
        %v784 = vadd.f32 %v752, 0.0
        %v785 = vadd.f32 %v753, 0.0
        %v786 = vadd.f32 %v754, 0.0
        %v787 = vadd.f32 %v755, 0.0
        %v788 = vadd.f32 %v756, 0.0
        %v789 = vadd.f32 %v757, 0.0
        %v790 = vadd.f32 %v758, 0.0
        %v791 = vadd.f32 %v759, 0.0
        %v792 = vadd.f32 %v760, 0.0
        %v793 = vadd.f32 %v761, 0.0
        %v794 = vadd.f32 %v762, 0.0
        %v795 = vadd.f32 %v763, 0.0
        %v796 = vadd.f32 %v764, 0.0
        %v797 = vadd.f32 %v765, 0.0
        %v798 = vadd.f32 %v766, 0.0
        %v799 = vadd.f32 %v767, 0.0
        %v800 = vadd.f32 %v768, 0.0
        %v801 = vld [vmem:[#allocation2 + $0x1] sm:$0xff]
        %v802 = vld [vmem:[#allocation2 + $0x9] sm:$0xff]
        %v803 = vld [vmem:[#allocation2 + $0x19] sm:$0xff]
        %v804 = vld [vmem:[#allocation2 + $0x21] sm:$0xff]
        %v805 = vld [vmem:[#allocation2 + $0x31] sm:$0xff]
        %v806 = vld [vmem:[#allocation2 + $0x39] sm:$0xff]
        %v807 = vld [vmem:[#allocation2 + $0x49] sm:$0xff]
        %v808 = vld [vmem:[#allocation2 + $0x51] sm:$0xff]
        %v809 = vld [vmem:[#allocation2 + $0x61] sm:$0xff]
        %v810 = vld [vmem:[#allocation2 + $0x69] sm:$0xff]
        %v811 = vld [vmem:[#allocation2 + $0x79] sm:$0xff]
        %v812 = vld [vmem:[#allocation2 + $0x81] sm:$0xff]
        %v813 = vld [vmem:[#allocation2 + $0x91] sm:$0xff]
        %v814 = vld [vmem:[#allocation2 + $0x99] sm:$0xff]
        %v815 = vld [vmem:[#allocation2 + $0xa9] sm:$0xff]
        %v816 = vld [vmem:[#allocation2 + $0xb1] sm:$0xff]
        %v817 = vld [vmem:[#allocation2 + $0xc1] sm:$0xff]
        %v818 = vld [vmem:[#allocation2 + $0xc9] sm:$0xff]
        %v819 = vld [vmem:[#allocation2 + $0xd9] sm:$0xff]
        %v820 = vld [vmem:[#allocation2 + $0xe1] sm:$0xff]
        %v821 = vld [vmem:[#allocation2 + $0xf1] sm:$0xff]
        %v822 = vld [vmem:[#allocation2 + $0xf9] sm:$0xff]
        %v823 = vld [vmem:[#allocation2 + $0x109] sm:$0xff]
        %v824 = vld [vmem:[#allocation2 + $0x111] sm:$0xff]
        %v825 = vld [vmem:[#allocation2 + $0x121] sm:$0xff]
        %v826 = vld [vmem:[#allocation2 + $0x129] sm:$0xff]
        %v827 = vld [vmem:[#allocation2 + $0x139] sm:$0xff]
        %v828 = vld [vmem:[#allocation2 + $0x141] sm:$0xff]
        %v829 = vld [vmem:[#allocation2 + $0x151] sm:$0xff]
        %v830 = vld [vmem:[#allocation2 + $0x159] sm:$0xff]
        %v831 = vld [vmem:[#allocation2 + $0x169] sm:$0xff]
        %v832 = vld [vmem:[#allocation2 + $0x171] sm:$0xff]
        %v833 = vld [vmem:[%s3 + $0x1] sm:$0x1]
        %v834 = vperm.slane %v833, 0
        %v835 = vmul.f32 %v801, %v834
        %v836 = vmul.f32 %v802, %v834
        %v837 = vmul.f32 %v803, %v834
        %v838 = vmul.f32 %v804, %v834
        %v839 = vmul.f32 %v805, %v834
        %v840 = vmul.f32 %v806, %v834
        %v841 = vmul.f32 %v807, %v834
        %v842 = vmul.f32 %v808, %v834
        %v843 = vmul.f32 %v809, %v834
        %v844 = vmul.f32 %v810, %v834
        %v845 = vmul.f32 %v811, %v834
        %v846 = vmul.f32 %v812, %v834
        %v847 = vmul.f32 %v813, %v834
        %v848 = vmul.f32 %v814, %v834
        %v849 = vmul.f32 %v815, %v834
        %v850 = vmul.f32 %v816, %v834
        %v851 = vmul.f32 %v817, %v834
        %v852 = vmul.f32 %v818, %v834
        %v853 = vmul.f32 %v819, %v834
        %v854 = vmul.f32 %v820, %v834
        %v855 = vmul.f32 %v821, %v834
        %v856 = vmul.f32 %v822, %v834
        %v857 = vmul.f32 %v823, %v834
        %v858 = vmul.f32 %v824, %v834
        %v859 = vmul.f32 %v825, %v834
        %v860 = vmul.f32 %v826, %v834
        %v861 = vmul.f32 %v827, %v834
        %v862 = vmul.f32 %v828, %v834
        %v863 = vmul.f32 %v829, %v834
        %v864 = vmul.f32 %v830, %v834
        %v865 = vmul.f32 %v831, %v834
        %v866 = vmul.f32 %v832, %v834
        %v867 = vadd.f32 %v769, %v835
        %v868 = vadd.f32 %v770, %v836
        %v869 = vadd.f32 %v771, %v837
        %v870 = vadd.f32 %v772, %v838
        %v871 = vadd.f32 %v773, %v839
        %v872 = vadd.f32 %v774, %v840
        %v873 = vadd.f32 %v775, %v841
        %v874 = vadd.f32 %v776, %v842
        %v875 = vadd.f32 %v777, %v843
        %v876 = vadd.f32 %v778, %v844
        %v877 = vadd.f32 %v779, %v845
        %v878 = vadd.f32 %v780, %v846
        %v879 = vadd.f32 %v781, %v847
        %v880 = vadd.f32 %v782, %v848
        %v881 = vadd.f32 %v783, %v849
        %v882 = vadd.f32 %v784, %v850
        %v883 = vadd.f32 %v785, %v851
        %v884 = vadd.f32 %v786, %v852
        %v885 = vadd.f32 %v787, %v853
        %v886 = vadd.f32 %v788, %v854
        %v887 = vadd.f32 %v789, %v855
        %v888 = vadd.f32 %v790, %v856
        %v889 = vadd.f32 %v791, %v857
        %v890 = vadd.f32 %v792, %v858
        %v891 = vadd.f32 %v793, %v859
        %v892 = vadd.f32 %v794, %v860
        %v893 = vadd.f32 %v795, %v861
        %v894 = vadd.f32 %v796, %v862
        %v895 = vadd.f32 %v797, %v863
        %v896 = vadd.f32 %v798, %v864
        %v897 = vadd.f32 %v799, %v865
        %v898 = vadd.f32 %v800, %v866
        %v899 = vld [vmem:[#allocation2 + $0x2] sm:$0xff]
        %v900 = vld [vmem:[#allocation2 + $0xa] sm:$0xff]
        %v901 = vld [vmem:[#allocation2 + $0x1a] sm:$0xff]
        %v902 = vld [vmem:[#allocation2 + $0x22] sm:$0xff]
        %v903 = vld [vmem:[#allocation2 + $0x32] sm:$0xff]
        %v904 = vld [vmem:[#allocation2 + $0x3a] sm:$0xff]
        %v905 = vld [vmem:[#allocation2 + $0x4a] sm:$0xff]
        %v906 = vld [vmem:[#allocation2 + $0x52] sm:$0xff]
        %v907 = vld [vmem:[#allocation2 + $0x62] sm:$0xff]
        %v908 = vld [vmem:[#allocation2 + $0x6a] sm:$0xff]
        %v909 = vld [vmem:[#allocation2 + $0x7a] sm:$0xff]
        %v910 = vld [vmem:[#allocation2 + $0x82] sm:$0xff]
        %v911 = vld [vmem:[#allocation2 + $0x92] sm:$0xff]
        %v912 = vld [vmem:[#allocation2 + $0x9a] sm:$0xff]
        %v913 = vld [vmem:[#allocation2 + $0xaa] sm:$0xff]
        %v914 = vld [vmem:[#allocation2 + $0xb2] sm:$0xff]
        %v915 = vld [vmem:[#allocation2 + $0xc2] sm:$0xff]
        %v916 = vld [vmem:[#allocation2 + $0xca] sm:$0xff]
        %v917 = vld [vmem:[#allocation2 + $0xda] sm:$0xff]
        %v918 = vld [vmem:[#allocation2 + $0xe2] sm:$0xff]
        %v919 = vld [vmem:[#allocation2 + $0xf2] sm:$0xff]
        %v920 = vld [vmem:[#allocation2 + $0xfa] sm:$0xff]
        %v921 = vld [vmem:[#allocation2 + $0x10a] sm:$0xff]
        %v922 = vld [vmem:[#allocation2 + $0x112] sm:$0xff]
        %v923 = vld [vmem:[#allocation2 + $0x122] sm:$0xff]
        %v924 = vld [vmem:[#allocation2 + $0x12a] sm:$0xff]
        %v925 = vld [vmem:[#allocation2 + $0x13a] sm:$0xff]
        %v926 = vld [vmem:[#allocation2 + $0x142] sm:$0xff]
        %v927 = vld [vmem:[#allocation2 + $0x152] sm:$0xff]
        %v928 = vld [vmem:[#allocation2 + $0x15a] sm:$0xff]
        %v929 = vld [vmem:[#allocation2 + $0x16a] sm:$0xff]
        %v930 = vld [vmem:[#allocation2 + $0x172] sm:$0xff]
        %v931 = vld [vmem:[%s3 + $0x2] sm:$0x1]
        %v932 = vperm.slane %v931, 0
        %v933 = vmul.f32 %v899, %v932
        %v934 = vmul.f32 %v900, %v932
        %v935 = vmul.f32 %v901, %v932
        %v936 = vmul.f32 %v902, %v932
        %v937 = vmul.f32 %v903, %v932
        %v938 = vmul.f32 %v904, %v932
        %v939 = vmul.f32 %v905, %v932
        %v940 = vmul.f32 %v906, %v932
        %v941 = vmul.f32 %v907, %v932
        %v942 = vmul.f32 %v908, %v932
        %v943 = vmul.f32 %v909, %v932
        %v944 = vmul.f32 %v910, %v932
        %v945 = vmul.f32 %v911, %v932
        %v946 = vmul.f32 %v912, %v932
        %v947 = vmul.f32 %v913, %v932
        %v948 = vmul.f32 %v914, %v932
        %v949 = vmul.f32 %v915, %v932
        %v950 = vmul.f32 %v916, %v932
        %v951 = vmul.f32 %v917, %v932
        %v952 = vmul.f32 %v918, %v932
        %v953 = vmul.f32 %v919, %v932
        %v954 = vmul.f32 %v920, %v932
        %v955 = vmul.f32 %v921, %v932
        %v956 = vmul.f32 %v922, %v932
        %v957 = vmul.f32 %v923, %v932
        %v958 = vmul.f32 %v924, %v932
        %v959 = vmul.f32 %v925, %v932
        %v960 = vmul.f32 %v926, %v932
        %v961 = vmul.f32 %v927, %v932
        %v962 = vmul.f32 %v928, %v932
        %v963 = vmul.f32 %v929, %v932
        %v964 = vmul.f32 %v930, %v932
        %v965 = vadd.f32 %v867, %v933
        %v966 = vadd.f32 %v868, %v934
        %v967 = vadd.f32 %v869, %v935
        %v968 = vadd.f32 %v870, %v936
        %v969 = vadd.f32 %v871, %v937
        %v970 = vadd.f32 %v872, %v938
        %v971 = vadd.f32 %v873, %v939
        %v972 = vadd.f32 %v874, %v940
        %v973 = vadd.f32 %v875, %v941
        %v974 = vadd.f32 %v876, %v942
        %v975 = vadd.f32 %v877, %v943
        %v976 = vadd.f32 %v878, %v944
        %v977 = vadd.f32 %v879, %v945
        %v978 = vadd.f32 %v880, %v946
        %v979 = vadd.f32 %v881, %v947
        %v980 = vadd.f32 %v882, %v948
        %v981 = vadd.f32 %v883, %v949
        %v982 = vadd.f32 %v884, %v950
        %v983 = vadd.f32 %v885, %v951
        %v984 = vadd.f32 %v886, %v952
        %v985 = vadd.f32 %v887, %v953
        %v986 = vadd.f32 %v888, %v954
        %v987 = vadd.f32 %v889, %v955
        %v988 = vadd.f32 %v890, %v956
        %v989 = vadd.f32 %v891, %v957
        %v990 = vadd.f32 %v892, %v958
        %v991 = vadd.f32 %v893, %v959
        %v992 = vadd.f32 %v894, %v960
        %v993 = vadd.f32 %v895, %v961
        %v994 = vadd.f32 %v896, %v962
        %v995 = vadd.f32 %v897, %v963
        %v996 = vadd.f32 %v898, %v964
        %v997 = vld [vmem:[%s637] sm:$0xff]
        %v998 = vld [vmem:[%s637 + $0x8] sm:$0xff]
        %v999 = vld [vmem:[%s637 + $0x18] sm:$0xff]
        %v1000 = vld [vmem:[%s637 + $0x20] sm:$0xff]
        %v1001 = vld [vmem:[%s637 + $0x30] sm:$0xff]
        %v1002 = vld [vmem:[%s637 + $0x38] sm:$0xff]
        %v1003 = vld [vmem:[%s637 + $0x48] sm:$0xff]
        %v1004 = vld [vmem:[%s637 + $0x50] sm:$0xff]
        %v1005 = vld [vmem:[%s637 + $0x60] sm:$0xff]
        %v1006 = vld [vmem:[%s637 + $0x68] sm:$0xff]
        %v1007 = vld [vmem:[%s637 + $0x78] sm:$0xff]
        %v1008 = vld [vmem:[%s637 + $0x80] sm:$0xff]
        %v1009 = vld [vmem:[%s637 + $0x90] sm:$0xff]
        %v1010 = vld [vmem:[%s637 + $0x98] sm:$0xff]
        %v1011 = vld [vmem:[%s637 + $0xa8] sm:$0xff]
        %v1012 = vld [vmem:[%s637 + $0xb0] sm:$0xff]
        %v1013 = vld [vmem:[%s637 + $0xc0] sm:$0xff]
        %v1014 = vld [vmem:[%s637 + $0xc8] sm:$0xff]
        %v1015 = vld [vmem:[%s637 + $0xd8] sm:$0xff]
        %v1016 = vld [vmem:[%s637 + $0xe0] sm:$0xff]
        %v1017 = vld [vmem:[%s637 + $0xf0] sm:$0xff]
        %v1018 = vld [vmem:[%s637 + $0xf8] sm:$0xff]
        %v1019 = vld [vmem:[%s637 + $0x108] sm:$0xff]
        %v1020 = vld [vmem:[%s637 + $0x110] sm:$0xff]
        %v1021 = vld [vmem:[%s637 + $0x120] sm:$0xff]
        %v1022 = vld [vmem:[%s637 + $0x128] sm:$0xff]
        %v1023 = vld [vmem:[%s637 + $0x138] sm:$0xff]
        %v1024 = vld [vmem:[%s637 + $0x140] sm:$0xff]
        %v1025 = vld [vmem:[%s637 + $0x150] sm:$0xff]
        %v1026 = vld [vmem:[%s637 + $0x158] sm:$0xff]
        %v1027 = vld [vmem:[%s637 + $0x168] sm:$0xff]
        %v1028 = vld [vmem:[%s637 + $0x170] sm:$0xff]
        %s1029 = scalar_lea.vmem %s3, 4
        %v1030 = vld [vmem:[%s1029] sm:$0x1]
        %v1031 = vperm.slane %v1030, 0
        %v1032 = vmul.f32 %v997, %v1031
        %v1033 = vmul.f32 %v998, %v1031
        %v1034 = vmul.f32 %v999, %v1031
        %v1035 = vmul.f32 %v1000, %v1031
        %v1036 = vmul.f32 %v1001, %v1031
        %v1037 = vmul.f32 %v1002, %v1031
        %v1038 = vmul.f32 %v1003, %v1031
        %v1039 = vmul.f32 %v1004, %v1031
        %v1040 = vmul.f32 %v1005, %v1031
        %v1041 = vmul.f32 %v1006, %v1031
        %v1042 = vmul.f32 %v1007, %v1031
        %v1043 = vmul.f32 %v1008, %v1031
        %v1044 = vmul.f32 %v1009, %v1031
        %v1045 = vmul.f32 %v1010, %v1031
        %v1046 = vmul.f32 %v1011, %v1031
        %v1047 = vmul.f32 %v1012, %v1031
        %v1048 = vmul.f32 %v1013, %v1031
        %v1049 = vmul.f32 %v1014, %v1031
        %v1050 = vmul.f32 %v1015, %v1031
        %v1051 = vmul.f32 %v1016, %v1031
        %v1052 = vmul.f32 %v1017, %v1031
        %v1053 = vmul.f32 %v1018, %v1031
        %v1054 = vmul.f32 %v1019, %v1031
        %v1055 = vmul.f32 %v1020, %v1031
        %v1056 = vmul.f32 %v1021, %v1031
        %v1057 = vmul.f32 %v1022, %v1031
        %v1058 = vmul.f32 %v1023, %v1031
        %v1059 = vmul.f32 %v1024, %v1031
        %v1060 = vmul.f32 %v1025, %v1031
        %v1061 = vmul.f32 %v1026, %v1031
        %v1062 = vmul.f32 %v1027, %v1031
        %v1063 = vmul.f32 %v1028, %v1031
        %v1064 = vadd.f32 %v965, %v1032
        %v1065 = vadd.f32 %v966, %v1033
        %v1066 = vadd.f32 %v967, %v1034
        %v1067 = vadd.f32 %v968, %v1035
        %v1068 = vadd.f32 %v969, %v1036
        %v1069 = vadd.f32 %v970, %v1037
        %v1070 = vadd.f32 %v971, %v1038
        %v1071 = vadd.f32 %v972, %v1039
        %v1072 = vadd.f32 %v973, %v1040
        %v1073 = vadd.f32 %v974, %v1041
        %v1074 = vadd.f32 %v975, %v1042
        %v1075 = vadd.f32 %v976, %v1043
        %v1076 = vadd.f32 %v977, %v1044
        %v1077 = vadd.f32 %v978, %v1045
        %v1078 = vadd.f32 %v979, %v1046
        %v1079 = vadd.f32 %v980, %v1047
        %v1080 = vadd.f32 %v981, %v1048
        %v1081 = vadd.f32 %v982, %v1049
        %v1082 = vadd.f32 %v983, %v1050
        %v1083 = vadd.f32 %v984, %v1051
        %v1084 = vadd.f32 %v985, %v1052
        %v1085 = vadd.f32 %v986, %v1053
        %v1086 = vadd.f32 %v987, %v1054
        %v1087 = vadd.f32 %v988, %v1055
        %v1088 = vadd.f32 %v989, %v1056
        %v1089 = vadd.f32 %v990, %v1057
        %v1090 = vadd.f32 %v991, %v1058
        %v1091 = vadd.f32 %v992, %v1059
        %v1092 = vadd.f32 %v993, %v1060
        %v1093 = vadd.f32 %v994, %v1061
        %v1094 = vadd.f32 %v995, %v1062
        %v1095 = vadd.f32 %v996, %v1063
        %v1096 = vld [vmem:[%s637 + $0x1] sm:$0xff]
        %v1097 = vld [vmem:[%s637 + $0x9] sm:$0xff]
        %v1098 = vld [vmem:[%s637 + $0x19] sm:$0xff]
        %v1099 = vld [vmem:[%s637 + $0x21] sm:$0xff]
        %v1100 = vld [vmem:[%s637 + $0x31] sm:$0xff]
        %v1101 = vld [vmem:[%s637 + $0x39] sm:$0xff]
        %v1102 = vld [vmem:[%s637 + $0x49] sm:$0xff]
        %v1103 = vld [vmem:[%s637 + $0x51] sm:$0xff]
        %v1104 = vld [vmem:[%s637 + $0x61] sm:$0xff]
        %v1105 = vld [vmem:[%s637 + $0x69] sm:$0xff]
        %v1106 = vld [vmem:[%s637 + $0x79] sm:$0xff]
        %v1107 = vld [vmem:[%s637 + $0x81] sm:$0xff]
        %v1108 = vld [vmem:[%s637 + $0x91] sm:$0xff]
        %v1109 = vld [vmem:[%s637 + $0x99] sm:$0xff]
        %v1110 = vld [vmem:[%s637 + $0xa9] sm:$0xff]
        %v1111 = vld [vmem:[%s637 + $0xb1] sm:$0xff]
        %v1112 = vld [vmem:[%s637 + $0xc1] sm:$0xff]
        %v1113 = vld [vmem:[%s637 + $0xc9] sm:$0xff]
        %v1114 = vld [vmem:[%s637 + $0xd9] sm:$0xff]
        %v1115 = vld [vmem:[%s637 + $0xe1] sm:$0xff]
        %v1116 = vld [vmem:[%s637 + $0xf1] sm:$0xff]
        %v1117 = vld [vmem:[%s637 + $0xf9] sm:$0xff]
        %v1118 = vld [vmem:[%s637 + $0x109] sm:$0xff]
        %v1119 = vld [vmem:[%s637 + $0x111] sm:$0xff]
        %v1120 = vld [vmem:[%s637 + $0x121] sm:$0xff]
        %v1121 = vld [vmem:[%s637 + $0x129] sm:$0xff]
        %v1122 = vld [vmem:[%s637 + $0x139] sm:$0xff]
        %v1123 = vld [vmem:[%s637 + $0x141] sm:$0xff]
        %v1124 = vld [vmem:[%s637 + $0x151] sm:$0xff]
        %v1125 = vld [vmem:[%s637 + $0x159] sm:$0xff]
        %v1126 = vld [vmem:[%s637 + $0x169] sm:$0xff]
        %v1127 = vld [vmem:[%s637 + $0x171] sm:$0xff]
        %v1128 = vld [vmem:[%s1029 + $0x1] sm:$0x1]
        %v1129 = vperm.slane %v1128, 0
        %v1130 = vmul.f32 %v1096, %v1129
        %v1131 = vmul.f32 %v1097, %v1129
        %v1132 = vmul.f32 %v1098, %v1129
        %v1133 = vmul.f32 %v1099, %v1129
        %v1134 = vmul.f32 %v1100, %v1129
        %v1135 = vmul.f32 %v1101, %v1129
        %v1136 = vmul.f32 %v1102, %v1129
        %v1137 = vmul.f32 %v1103, %v1129
        %v1138 = vmul.f32 %v1104, %v1129
        %v1139 = vmul.f32 %v1105, %v1129
        %v1140 = vmul.f32 %v1106, %v1129
        %v1141 = vmul.f32 %v1107, %v1129
        %v1142 = vmul.f32 %v1108, %v1129
        %v1143 = vmul.f32 %v1109, %v1129
        %v1144 = vmul.f32 %v1110, %v1129
        %v1145 = vmul.f32 %v1111, %v1129
        %v1146 = vmul.f32 %v1112, %v1129
        %v1147 = vmul.f32 %v1113, %v1129
        %v1148 = vmul.f32 %v1114, %v1129
        %v1149 = vmul.f32 %v1115, %v1129
        %v1150 = vmul.f32 %v1116, %v1129
        %v1151 = vmul.f32 %v1117, %v1129
        %v1152 = vmul.f32 %v1118, %v1129
        %v1153 = vmul.f32 %v1119, %v1129
        %v1154 = vmul.f32 %v1120, %v1129
        %v1155 = vmul.f32 %v1121, %v1129
        %v1156 = vmul.f32 %v1122, %v1129
        %v1157 = vmul.f32 %v1123, %v1129
        %v1158 = vmul.f32 %v1124, %v1129
        %v1159 = vmul.f32 %v1125, %v1129
        %v1160 = vmul.f32 %v1126, %v1129
        %v1161 = vmul.f32 %v1127, %v1129
        %v1162 = vadd.f32 %v1064, %v1130
        %v1163 = vadd.f32 %v1065, %v1131
        %v1164 = vadd.f32 %v1066, %v1132
        %v1165 = vadd.f32 %v1067, %v1133
        %v1166 = vadd.f32 %v1068, %v1134
        %v1167 = vadd.f32 %v1069, %v1135
        %v1168 = vadd.f32 %v1070, %v1136
        %v1169 = vadd.f32 %v1071, %v1137
        %v1170 = vadd.f32 %v1072, %v1138
        %v1171 = vadd.f32 %v1073, %v1139
        %v1172 = vadd.f32 %v1074, %v1140
        %v1173 = vadd.f32 %v1075, %v1141
        %v1174 = vadd.f32 %v1076, %v1142
        %v1175 = vadd.f32 %v1077, %v1143
        %v1176 = vadd.f32 %v1078, %v1144
        %v1177 = vadd.f32 %v1079, %v1145
        %v1178 = vadd.f32 %v1080, %v1146
        %v1179 = vadd.f32 %v1081, %v1147
        %v1180 = vadd.f32 %v1082, %v1148
        %v1181 = vadd.f32 %v1083, %v1149
        %v1182 = vadd.f32 %v1084, %v1150
        %v1183 = vadd.f32 %v1085, %v1151
        %v1184 = vadd.f32 %v1086, %v1152
        %v1185 = vadd.f32 %v1087, %v1153
        %v1186 = vadd.f32 %v1088, %v1154
        %v1187 = vadd.f32 %v1089, %v1155
        %v1188 = vadd.f32 %v1090, %v1156
        %v1189 = vadd.f32 %v1091, %v1157
        %v1190 = vadd.f32 %v1092, %v1158
        %v1191 = vadd.f32 %v1093, %v1159
        %v1192 = vadd.f32 %v1094, %v1160
        %v1193 = vadd.f32 %v1095, %v1161
        %v1194 = vld [vmem:[%s637 + $0x2] sm:$0xff]
        %v1195 = vld [vmem:[%s637 + $0xa] sm:$0xff]
        %v1196 = vld [vmem:[%s637 + $0x1a] sm:$0xff]
        %v1197 = vld [vmem:[%s637 + $0x22] sm:$0xff]
        %v1198 = vld [vmem:[%s637 + $0x32] sm:$0xff]
        %v1199 = vld [vmem:[%s637 + $0x3a] sm:$0xff]
        %v1200 = vld [vmem:[%s637 + $0x4a] sm:$0xff]
        %v1201 = vld [vmem:[%s637 + $0x52] sm:$0xff]
        %v1202 = vld [vmem:[%s637 + $0x62] sm:$0xff]
        %v1203 = vld [vmem:[%s637 + $0x6a] sm:$0xff]
        %v1204 = vld [vmem:[%s637 + $0x7a] sm:$0xff]
        %v1205 = vld [vmem:[%s637 + $0x82] sm:$0xff]
        %v1206 = vld [vmem:[%s637 + $0x92] sm:$0xff]
        %v1207 = vld [vmem:[%s637 + $0x9a] sm:$0xff]
        %v1208 = vld [vmem:[%s637 + $0xaa] sm:$0xff]
        %v1209 = vld [vmem:[%s637 + $0xb2] sm:$0xff]
        %v1210 = vld [vmem:[%s637 + $0xc2] sm:$0xff]
        %v1211 = vld [vmem:[%s637 + $0xca] sm:$0xff]
        %v1212 = vld [vmem:[%s637 + $0xda] sm:$0xff]
        %v1213 = vld [vmem:[%s637 + $0xe2] sm:$0xff]
        %v1214 = vld [vmem:[%s637 + $0xf2] sm:$0xff]
        %v1215 = vld [vmem:[%s637 + $0xfa] sm:$0xff]
        %v1216 = vld [vmem:[%s637 + $0x10a] sm:$0xff]
        %v1217 = vld [vmem:[%s637 + $0x112] sm:$0xff]
        %v1218 = vld [vmem:[%s637 + $0x122] sm:$0xff]
        %v1219 = vld [vmem:[%s637 + $0x12a] sm:$0xff]
        %v1220 = vld [vmem:[%s637 + $0x13a] sm:$0xff]
        %v1221 = vld [vmem:[%s637 + $0x142] sm:$0xff]
        %v1222 = vld [vmem:[%s637 + $0x152] sm:$0xff]
        %v1223 = vld [vmem:[%s637 + $0x15a] sm:$0xff]
        %v1224 = vld [vmem:[%s637 + $0x16a] sm:$0xff]
        %v1225 = vld [vmem:[%s637 + $0x172] sm:$0xff]
        %v1226 = vld [vmem:[%s1029 + $0x2] sm:$0x1]
        %v1227 = vperm.slane %v1226, 0
        %v1228 = vmul.f32 %v1194, %v1227
        %v1229 = vmul.f32 %v1195, %v1227
        %v1230 = vmul.f32 %v1196, %v1227
        %v1231 = vmul.f32 %v1197, %v1227
        %v1232 = vmul.f32 %v1198, %v1227
        %v1233 = vmul.f32 %v1199, %v1227
        %v1234 = vmul.f32 %v1200, %v1227
        %v1235 = vmul.f32 %v1201, %v1227
        %v1236 = vmul.f32 %v1202, %v1227
        %v1237 = vmul.f32 %v1203, %v1227
        %v1238 = vmul.f32 %v1204, %v1227
        %v1239 = vmul.f32 %v1205, %v1227
        %v1240 = vmul.f32 %v1206, %v1227
        %v1241 = vmul.f32 %v1207, %v1227
        %v1242 = vmul.f32 %v1208, %v1227
        %v1243 = vmul.f32 %v1209, %v1227
        %v1244 = vmul.f32 %v1210, %v1227
        %v1245 = vmul.f32 %v1211, %v1227
        %v1246 = vmul.f32 %v1212, %v1227
        %v1247 = vmul.f32 %v1213, %v1227
        %v1248 = vmul.f32 %v1214, %v1227
        %v1249 = vmul.f32 %v1215, %v1227
        %v1250 = vmul.f32 %v1216, %v1227
        %v1251 = vmul.f32 %v1217, %v1227
        %v1252 = vmul.f32 %v1218, %v1227
        %v1253 = vmul.f32 %v1219, %v1227
        %v1254 = vmul.f32 %v1220, %v1227
        %v1255 = vmul.f32 %v1221, %v1227
        %v1256 = vmul.f32 %v1222, %v1227
        %v1257 = vmul.f32 %v1223, %v1227
        %v1258 = vmul.f32 %v1224, %v1227
        %v1259 = vmul.f32 %v1225, %v1227
        %v1260 = vadd.f32 %v1162, %v1228
        %v1261 = vadd.f32 %v1163, %v1229
        %v1262 = vadd.f32 %v1164, %v1230
        %v1263 = vadd.f32 %v1165, %v1231
        %v1264 = vadd.f32 %v1166, %v1232
        %v1265 = vadd.f32 %v1167, %v1233
        %v1266 = vadd.f32 %v1168, %v1234
        %v1267 = vadd.f32 %v1169, %v1235
        %v1268 = vadd.f32 %v1170, %v1236
        %v1269 = vadd.f32 %v1171, %v1237
        %v1270 = vadd.f32 %v1172, %v1238
        %v1271 = vadd.f32 %v1173, %v1239
        %v1272 = vadd.f32 %v1174, %v1240
        %v1273 = vadd.f32 %v1175, %v1241
        %v1274 = vadd.f32 %v1176, %v1242
        %v1275 = vadd.f32 %v1177, %v1243
        %v1276 = vadd.f32 %v1178, %v1244
        %v1277 = vadd.f32 %v1179, %v1245
        %v1278 = vadd.f32 %v1180, %v1246
        %v1279 = vadd.f32 %v1181, %v1247
        %v1280 = vadd.f32 %v1182, %v1248
        %v1281 = vadd.f32 %v1183, %v1249
        %v1282 = vadd.f32 %v1184, %v1250
        %v1283 = vadd.f32 %v1185, %v1251
        %v1284 = vadd.f32 %v1186, %v1252
        %v1285 = vadd.f32 %v1187, %v1253
        %v1286 = vadd.f32 %v1188, %v1254
        %v1287 = vadd.f32 %v1189, %v1255
        %v1288 = vadd.f32 %v1190, %v1256
        %v1289 = vadd.f32 %v1191, %v1257
        %v1290 = vadd.f32 %v1192, %v1258
        %v1291 = vadd.f32 %v1193, %v1259
        %s1292 = scalar_lea.vmem [#allocation2], 48
        %v1293 = vld [vmem:[%s1292] sm:$0xff]
        %v1294 = vld [vmem:[%s1292 + $0x8] sm:$0xff]
        %v1295 = vld [vmem:[%s1292 + $0x18] sm:$0xff]
        %v1296 = vld [vmem:[%s1292 + $0x20] sm:$0xff]
        %v1297 = vld [vmem:[%s1292 + $0x30] sm:$0xff]
        %v1298 = vld [vmem:[%s1292 + $0x38] sm:$0xff]
        %v1299 = vld [vmem:[%s1292 + $0x48] sm:$0xff]
        %v1300 = vld [vmem:[%s1292 + $0x50] sm:$0xff]
        %v1301 = vld [vmem:[%s1292 + $0x60] sm:$0xff]
        %v1302 = vld [vmem:[%s1292 + $0x68] sm:$0xff]
        %v1303 = vld [vmem:[%s1292 + $0x78] sm:$0xff]
        %v1304 = vld [vmem:[%s1292 + $0x80] sm:$0xff]
        %v1305 = vld [vmem:[%s1292 + $0x90] sm:$0xff]
        %v1306 = vld [vmem:[%s1292 + $0x98] sm:$0xff]
        %v1307 = vld [vmem:[%s1292 + $0xa8] sm:$0xff]
        %v1308 = vld [vmem:[%s1292 + $0xb0] sm:$0xff]
        %v1309 = vld [vmem:[%s1292 + $0xc0] sm:$0xff]
        %v1310 = vld [vmem:[%s1292 + $0xc8] sm:$0xff]
        %v1311 = vld [vmem:[%s1292 + $0xd8] sm:$0xff]
        %v1312 = vld [vmem:[%s1292 + $0xe0] sm:$0xff]
        %v1313 = vld [vmem:[%s1292 + $0xf0] sm:$0xff]
        %v1314 = vld [vmem:[%s1292 + $0xf8] sm:$0xff]
        %v1315 = vld [vmem:[%s1292 + $0x108] sm:$0xff]
        %v1316 = vld [vmem:[%s1292 + $0x110] sm:$0xff]
        %v1317 = vld [vmem:[%s1292 + $0x120] sm:$0xff]
        %v1318 = vld [vmem:[%s1292 + $0x128] sm:$0xff]
        %v1319 = vld [vmem:[%s1292 + $0x138] sm:$0xff]
        %v1320 = vld [vmem:[%s1292 + $0x140] sm:$0xff]
        %v1321 = vld [vmem:[%s1292 + $0x150] sm:$0xff]
        %v1322 = vld [vmem:[%s1292 + $0x158] sm:$0xff]
        %v1323 = vld [vmem:[%s1292 + $0x168] sm:$0xff]
        %v1324 = vld [vmem:[%s1292 + $0x170] sm:$0xff]
        %s1325 = scalar_lea.vmem %s3, 8
        %v1326 = vld [vmem:[%s1325] sm:$0x1]
        %v1327 = vperm.slane %v1326, 0
        %v1328 = vmul.f32 %v1293, %v1327
        %v1329 = vmul.f32 %v1294, %v1327
        %v1330 = vmul.f32 %v1295, %v1327
        %v1331 = vmul.f32 %v1296, %v1327
        %v1332 = vmul.f32 %v1297, %v1327
        %v1333 = vmul.f32 %v1298, %v1327
        %v1334 = vmul.f32 %v1299, %v1327
        %v1335 = vmul.f32 %v1300, %v1327
        %v1336 = vmul.f32 %v1301, %v1327
        %v1337 = vmul.f32 %v1302, %v1327
        %v1338 = vmul.f32 %v1303, %v1327
        %v1339 = vmul.f32 %v1304, %v1327
        %v1340 = vmul.f32 %v1305, %v1327
        %v1341 = vmul.f32 %v1306, %v1327
        %v1342 = vmul.f32 %v1307, %v1327
        %v1343 = vmul.f32 %v1308, %v1327
        %v1344 = vmul.f32 %v1309, %v1327
        %v1345 = vmul.f32 %v1310, %v1327
        %v1346 = vmul.f32 %v1311, %v1327
        %v1347 = vmul.f32 %v1312, %v1327
        %v1348 = vmul.f32 %v1313, %v1327
        %v1349 = vmul.f32 %v1314, %v1327
        %v1350 = vmul.f32 %v1315, %v1327
        %v1351 = vmul.f32 %v1316, %v1327
        %v1352 = vmul.f32 %v1317, %v1327
        %v1353 = vmul.f32 %v1318, %v1327
        %v1354 = vmul.f32 %v1319, %v1327
        %v1355 = vmul.f32 %v1320, %v1327
        %v1356 = vmul.f32 %v1321, %v1327
        %v1357 = vmul.f32 %v1322, %v1327
        %v1358 = vmul.f32 %v1323, %v1327
        %v1359 = vmul.f32 %v1324, %v1327
        %v1360 = vadd.f32 %v1260, %v1328
        %v1361 = vadd.f32 %v1261, %v1329
        %v1362 = vadd.f32 %v1262, %v1330
        %v1363 = vadd.f32 %v1263, %v1331
        %v1364 = vadd.f32 %v1264, %v1332
        %v1365 = vadd.f32 %v1265, %v1333
        %v1366 = vadd.f32 %v1266, %v1334
        %v1367 = vadd.f32 %v1267, %v1335
        %v1368 = vadd.f32 %v1268, %v1336
        %v1369 = vadd.f32 %v1269, %v1337
        %v1370 = vadd.f32 %v1270, %v1338
        %v1371 = vadd.f32 %v1271, %v1339
        %v1372 = vadd.f32 %v1272, %v1340
        %v1373 = vadd.f32 %v1273, %v1341
        %v1374 = vadd.f32 %v1274, %v1342
        %v1375 = vadd.f32 %v1275, %v1343
        %v1376 = vadd.f32 %v1276, %v1344
        %v1377 = vadd.f32 %v1277, %v1345
        %v1378 = vadd.f32 %v1278, %v1346
        %v1379 = vadd.f32 %v1279, %v1347
        %v1380 = vadd.f32 %v1280, %v1348
        %v1381 = vadd.f32 %v1281, %v1349
        %v1382 = vadd.f32 %v1282, %v1350
        %v1383 = vadd.f32 %v1283, %v1351
        %v1384 = vadd.f32 %v1284, %v1352
        %v1385 = vadd.f32 %v1285, %v1353
        %v1386 = vadd.f32 %v1286, %v1354
        %v1387 = vadd.f32 %v1287, %v1355
        %v1388 = vadd.f32 %v1288, %v1356
        %v1389 = vadd.f32 %v1289, %v1357
        %v1390 = vadd.f32 %v1290, %v1358
        %v1391 = vadd.f32 %v1291, %v1359
        %v1392 = vld [vmem:[%s1292 + $0x1] sm:$0xff]
        %v1393 = vld [vmem:[%s1292 + $0x9] sm:$0xff]
        %v1394 = vld [vmem:[%s1292 + $0x19] sm:$0xff]
        %v1395 = vld [vmem:[%s1292 + $0x21] sm:$0xff]
        %v1396 = vld [vmem:[%s1292 + $0x31] sm:$0xff]
        %v1397 = vld [vmem:[%s1292 + $0x39] sm:$0xff]
        %v1398 = vld [vmem:[%s1292 + $0x49] sm:$0xff]
        %v1399 = vld [vmem:[%s1292 + $0x51] sm:$0xff]
        %v1400 = vld [vmem:[%s1292 + $0x61] sm:$0xff]
        %v1401 = vld [vmem:[%s1292 + $0x69] sm:$0xff]
        %v1402 = vld [vmem:[%s1292 + $0x79] sm:$0xff]
        %v1403 = vld [vmem:[%s1292 + $0x81] sm:$0xff]
        %v1404 = vld [vmem:[%s1292 + $0x91] sm:$0xff]
        %v1405 = vld [vmem:[%s1292 + $0x99] sm:$0xff]
        %v1406 = vld [vmem:[%s1292 + $0xa9] sm:$0xff]
        %v1407 = vld [vmem:[%s1292 + $0xb1] sm:$0xff]
        %v1408 = vld [vmem:[%s1292 + $0xc1] sm:$0xff]
        %v1409 = vld [vmem:[%s1292 + $0xc9] sm:$0xff]
        %v1410 = vld [vmem:[%s1292 + $0xd9] sm:$0xff]
        %v1411 = vld [vmem:[%s1292 + $0xe1] sm:$0xff]
        %v1412 = vld [vmem:[%s1292 + $0xf1] sm:$0xff]
        %v1413 = vld [vmem:[%s1292 + $0xf9] sm:$0xff]
        %v1414 = vld [vmem:[%s1292 + $0x109] sm:$0xff]
        %v1415 = vld [vmem:[%s1292 + $0x111] sm:$0xff]
        %v1416 = vld [vmem:[%s1292 + $0x121] sm:$0xff]
        %v1417 = vld [vmem:[%s1292 + $0x129] sm:$0xff]
        %v1418 = vld [vmem:[%s1292 + $0x139] sm:$0xff]
        %v1419 = vld [vmem:[%s1292 + $0x141] sm:$0xff]
        %v1420 = vld [vmem:[%s1292 + $0x151] sm:$0xff]
        %v1421 = vld [vmem:[%s1292 + $0x159] sm:$0xff]
        %v1422 = vld [vmem:[%s1292 + $0x169] sm:$0xff]
        %v1423 = vld [vmem:[%s1292 + $0x171] sm:$0xff]
        %v1424 = vld [vmem:[%s1325 + $0x1] sm:$0x1]
        %v1425 = vperm.slane %v1424, 0
        %v1426 = vmul.f32 %v1392, %v1425
        %v1427 = vmul.f32 %v1393, %v1425
        %v1428 = vmul.f32 %v1394, %v1425
        %v1429 = vmul.f32 %v1395, %v1425
        %v1430 = vmul.f32 %v1396, %v1425
        %v1431 = vmul.f32 %v1397, %v1425
        %v1432 = vmul.f32 %v1398, %v1425
        %v1433 = vmul.f32 %v1399, %v1425
        %v1434 = vmul.f32 %v1400, %v1425
        %v1435 = vmul.f32 %v1401, %v1425
        %v1436 = vmul.f32 %v1402, %v1425
        %v1437 = vmul.f32 %v1403, %v1425
        %v1438 = vmul.f32 %v1404, %v1425
        %v1439 = vmul.f32 %v1405, %v1425
        %v1440 = vmul.f32 %v1406, %v1425
        %v1441 = vmul.f32 %v1407, %v1425
        %v1442 = vmul.f32 %v1408, %v1425
        %v1443 = vmul.f32 %v1409, %v1425
        %v1444 = vmul.f32 %v1410, %v1425
        %v1445 = vmul.f32 %v1411, %v1425
        %v1446 = vmul.f32 %v1412, %v1425
        %v1447 = vmul.f32 %v1413, %v1425
        %v1448 = vmul.f32 %v1414, %v1425
        %v1449 = vmul.f32 %v1415, %v1425
        %v1450 = vmul.f32 %v1416, %v1425
        %v1451 = vmul.f32 %v1417, %v1425
        %v1452 = vmul.f32 %v1418, %v1425
        %v1453 = vmul.f32 %v1419, %v1425
        %v1454 = vmul.f32 %v1420, %v1425
        %v1455 = vmul.f32 %v1421, %v1425
        %v1456 = vmul.f32 %v1422, %v1425
        %v1457 = vmul.f32 %v1423, %v1425
        %v1458 = vadd.f32 %v1360, %v1426
        %v1459 = vadd.f32 %v1361, %v1427
        %v1460 = vadd.f32 %v1362, %v1428
        %v1461 = vadd.f32 %v1363, %v1429
        %v1462 = vadd.f32 %v1364, %v1430
        %v1463 = vadd.f32 %v1365, %v1431
        %v1464 = vadd.f32 %v1366, %v1432
        %v1465 = vadd.f32 %v1367, %v1433
        %v1466 = vadd.f32 %v1368, %v1434
        %v1467 = vadd.f32 %v1369, %v1435
        %v1468 = vadd.f32 %v1370, %v1436
        %v1469 = vadd.f32 %v1371, %v1437
        %v1470 = vadd.f32 %v1372, %v1438
        %v1471 = vadd.f32 %v1373, %v1439
        %v1472 = vadd.f32 %v1374, %v1440
        %v1473 = vadd.f32 %v1375, %v1441
        %v1474 = vadd.f32 %v1376, %v1442
        %v1475 = vadd.f32 %v1377, %v1443
        %v1476 = vadd.f32 %v1378, %v1444
        %v1477 = vadd.f32 %v1379, %v1445
        %v1478 = vadd.f32 %v1380, %v1446
        %v1479 = vadd.f32 %v1381, %v1447
        %v1480 = vadd.f32 %v1382, %v1448
        %v1481 = vadd.f32 %v1383, %v1449
        %v1482 = vadd.f32 %v1384, %v1450
        %v1483 = vadd.f32 %v1385, %v1451
        %v1484 = vadd.f32 %v1386, %v1452
        %v1485 = vadd.f32 %v1387, %v1453
        %v1486 = vadd.f32 %v1388, %v1454
        %v1487 = vadd.f32 %v1389, %v1455
        %v1488 = vadd.f32 %v1390, %v1456
        %v1489 = vadd.f32 %v1391, %v1457
        %v1490 = vld [vmem:[%s1292 + $0x2] sm:$0xff]
        %v1491 = vld [vmem:[%s1292 + $0xa] sm:$0xff]
        %v1492 = vld [vmem:[%s1292 + $0x1a] sm:$0xff]
        %v1493 = vld [vmem:[%s1292 + $0x22] sm:$0xff]
        %v1494 = vld [vmem:[%s1292 + $0x32] sm:$0xff]
        %v1495 = vld [vmem:[%s1292 + $0x3a] sm:$0xff]
        %v1496 = vld [vmem:[%s1292 + $0x4a] sm:$0xff]
        %v1497 = vld [vmem:[%s1292 + $0x52] sm:$0xff]
        %v1498 = vld [vmem:[%s1292 + $0x62] sm:$0xff]
        %v1499 = vld [vmem:[%s1292 + $0x6a] sm:$0xff]
        %v1500 = vld [vmem:[%s1292 + $0x7a] sm:$0xff]
        %v1501 = vld [vmem:[%s1292 + $0x82] sm:$0xff]
        %v1502 = vld [vmem:[%s1292 + $0x92] sm:$0xff]
        %v1503 = vld [vmem:[%s1292 + $0x9a] sm:$0xff]
        %v1504 = vld [vmem:[%s1292 + $0xaa] sm:$0xff]
        %v1505 = vld [vmem:[%s1292 + $0xb2] sm:$0xff]
        %v1506 = vld [vmem:[%s1292 + $0xc2] sm:$0xff]
        %v1507 = vld [vmem:[%s1292 + $0xca] sm:$0xff]
        %v1508 = vld [vmem:[%s1292 + $0xda] sm:$0xff]
        %v1509 = vld [vmem:[%s1292 + $0xe2] sm:$0xff]
        %v1510 = vld [vmem:[%s1292 + $0xf2] sm:$0xff]
        %v1511 = vld [vmem:[%s1292 + $0xfa] sm:$0xff]
        %v1512 = vld [vmem:[%s1292 + $0x10a] sm:$0xff]
        %v1513 = vld [vmem:[%s1292 + $0x112] sm:$0xff]
        %v1514 = vld [vmem:[%s1292 + $0x122] sm:$0xff]
        %v1515 = vld [vmem:[%s1292 + $0x12a] sm:$0xff]
        %v1516 = vld [vmem:[%s1292 + $0x13a] sm:$0xff]
        %v1517 = vld [vmem:[%s1292 + $0x142] sm:$0xff]
        %v1518 = vld [vmem:[%s1292 + $0x152] sm:$0xff]
        %v1519 = vld [vmem:[%s1292 + $0x15a] sm:$0xff]
        %v1520 = vld [vmem:[%s1292 + $0x16a] sm:$0xff]
        %v1521 = vld [vmem:[%s1292 + $0x172] sm:$0xff]
        %v1522 = vld [vmem:[%s1325 + $0x2] sm:$0x1]
        %v1523 = vperm.slane %v1522, 0
        %v1524 = vmul.f32 %v1490, %v1523
        %v1525 = vmul.f32 %v1491, %v1523
        %v1526 = vmul.f32 %v1492, %v1523
        %v1527 = vmul.f32 %v1493, %v1523
        %v1528 = vmul.f32 %v1494, %v1523
        %v1529 = vmul.f32 %v1495, %v1523
        %v1530 = vmul.f32 %v1496, %v1523
        %v1531 = vmul.f32 %v1497, %v1523
        %v1532 = vmul.f32 %v1498, %v1523
        %v1533 = vmul.f32 %v1499, %v1523
        %v1534 = vmul.f32 %v1500, %v1523
        %v1535 = vmul.f32 %v1501, %v1523
        %v1536 = vmul.f32 %v1502, %v1523
        %v1537 = vmul.f32 %v1503, %v1523
        %v1538 = vmul.f32 %v1504, %v1523
        %v1539 = vmul.f32 %v1505, %v1523
        %v1540 = vmul.f32 %v1506, %v1523
        %v1541 = vmul.f32 %v1507, %v1523
        %v1542 = vmul.f32 %v1508, %v1523
        %v1543 = vmul.f32 %v1509, %v1523
        %v1544 = vmul.f32 %v1510, %v1523
        %v1545 = vmul.f32 %v1511, %v1523
        %v1546 = vmul.f32 %v1512, %v1523
        %v1547 = vmul.f32 %v1513, %v1523
        %v1548 = vmul.f32 %v1514, %v1523
        %v1549 = vmul.f32 %v1515, %v1523
        %v1550 = vmul.f32 %v1516, %v1523
        %v1551 = vmul.f32 %v1517, %v1523
        %v1552 = vmul.f32 %v1518, %v1523
        %v1553 = vmul.f32 %v1519, %v1523
        %v1554 = vmul.f32 %v1520, %v1523
        %v1555 = vmul.f32 %v1521, %v1523
        %v1556 = vadd.f32 %v1458, %v1524
        %v1557 = vadd.f32 %v1459, %v1525
        %v1558 = vadd.f32 %v1460, %v1526
        %v1559 = vadd.f32 %v1461, %v1527
        %v1560 = vadd.f32 %v1462, %v1528
        %v1561 = vadd.f32 %v1463, %v1529
        %v1562 = vadd.f32 %v1464, %v1530
        %v1563 = vadd.f32 %v1465, %v1531
        %v1564 = vadd.f32 %v1466, %v1532
        %v1565 = vadd.f32 %v1467, %v1533
        %v1566 = vadd.f32 %v1468, %v1534
        %v1567 = vadd.f32 %v1469, %v1535
        %v1568 = vadd.f32 %v1470, %v1536
        %v1569 = vadd.f32 %v1471, %v1537
        %v1570 = vadd.f32 %v1472, %v1538
        %v1571 = vadd.f32 %v1473, %v1539
        %v1572 = vadd.f32 %v1474, %v1540
        %v1573 = vadd.f32 %v1475, %v1541
        %v1574 = vadd.f32 %v1476, %v1542
        %v1575 = vadd.f32 %v1477, %v1543
        %v1576 = vadd.f32 %v1478, %v1544
        %v1577 = vadd.f32 %v1479, %v1545
        %v1578 = vadd.f32 %v1480, %v1546
        %v1579 = vadd.f32 %v1481, %v1547
        %v1580 = vadd.f32 %v1482, %v1548
        %v1581 = vadd.f32 %v1483, %v1549
        %v1582 = vadd.f32 %v1484, %v1550
        %v1583 = vadd.f32 %v1485, %v1551
        %v1584 = vadd.f32 %v1486, %v1552
        %v1585 = vadd.f32 %v1487, %v1553
        %v1586 = vadd.f32 %v1488, %v1554
        %v1587 = vadd.f32 %v1489, %v1555
        %v1588 = vld [vmem:[%s4] sm:$0x1]
        %v1590 = vperm.slane %v1588, 0
        %v1592 = vadd.f32 %v1556, %v1590
        %v1593 = vadd.f32 %v1557, %v1590
        %v1594 = vadd.f32 %v1558, %v1590
        %v1595 = vadd.f32 %v1559, %v1590
        %v1596 = vadd.f32 %v1560, %v1590
        %v1597 = vadd.f32 %v1561, %v1590
        %v1598 = vadd.f32 %v1562, %v1590
        %v1599 = vadd.f32 %v1563, %v1590
        %v1600 = vadd.f32 %v1564, %v1590
        %v1601 = vadd.f32 %v1565, %v1590
        %v1602 = vadd.f32 %v1566, %v1590
        %v1603 = vadd.f32 %v1567, %v1590
        %v1604 = vadd.f32 %v1568, %v1590
        %v1605 = vadd.f32 %v1569, %v1590
        %v1606 = vadd.f32 %v1570, %v1590
        %v1607 = vadd.f32 %v1571, %v1590
        %v1608 = vadd.f32 %v1572, %v1590
        %v1609 = vadd.f32 %v1573, %v1590
        %v1610 = vadd.f32 %v1574, %v1590
        %v1611 = vadd.f32 %v1575, %v1590
        %v1612 = vadd.f32 %v1576, %v1590
        %v1613 = vadd.f32 %v1577, %v1590
        %v1614 = vadd.f32 %v1578, %v1590
        %v1615 = vadd.f32 %v1579, %v1590
        %v1616 = vadd.f32 %v1580, %v1590
        %v1617 = vadd.f32 %v1581, %v1590
        %v1618 = vadd.f32 %v1582, %v1590
        %v1619 = vadd.f32 %v1583, %v1590
        %v1620 = vadd.f32 %v1584, %v1590
        %v1621 = vadd.f32 %v1585, %v1590
        %v1622 = vadd.f32 %v1586, %v1590
        %v1623 = vadd.f32 %v1587, %v1590
        %v1624 = vmax.f32 %v1592, 0.0
        %v1625 = vmax.f32 %v1593, 0.0
        %v1626 = vmax.f32 %v1594, 0.0
        %v1627 = vmax.f32 %v1595, 0.0
        %v1628 = vmax.f32 %v1596, 0.0
        %v1629 = vmax.f32 %v1597, 0.0
        %v1630 = vmax.f32 %v1598, 0.0
        %v1631 = vmax.f32 %v1599, 0.0
        %v1632 = vmax.f32 %v1600, 0.0
        %v1633 = vmax.f32 %v1601, 0.0
        %v1634 = vmax.f32 %v1602, 0.0
        %v1635 = vmax.f32 %v1603, 0.0
        %v1636 = vmax.f32 %v1604, 0.0
        %v1637 = vmax.f32 %v1605, 0.0
        %v1638 = vmax.f32 %v1606, 0.0
        %v1639 = vmax.f32 %v1607, 0.0
        %v1640 = vmax.f32 %v1608, 0.0
        %v1641 = vmax.f32 %v1609, 0.0
        %v1642 = vmax.f32 %v1610, 0.0
        %v1643 = vmax.f32 %v1611, 0.0
        %v1644 = vmax.f32 %v1612, 0.0
        %v1645 = vmax.f32 %v1613, 0.0
        %v1646 = vmax.f32 %v1614, 0.0
        %v1647 = vmax.f32 %v1615, 0.0
        %v1648 = vmax.f32 %v1616, 0.0
        %v1649 = vmax.f32 %v1617, 0.0
        %v1650 = vmax.f32 %v1618, 0.0
        %v1651 = vmax.f32 %v1619, 0.0
        %v1652 = vmax.f32 %v1620, 0.0
        %v1653 = vmax.f32 %v1621, 0.0
        %v1654 = vmax.f32 %v1622, 0.0
        %v1655 = vmax.f32 %v1623, 0.0
        %v1656 = vmin.f32 %v1624, 6.0
        %v1657 = vmin.f32 %v1625, 6.0
        %v1658 = vmin.f32 %v1626, 6.0
        %v1659 = vmin.f32 %v1627, 6.0
        %v1660 = vmin.f32 %v1628, 6.0
        %v1661 = vmin.f32 %v1629, 6.0
        %v1662 = vmin.f32 %v1630, 6.0
        %v1663 = vmin.f32 %v1631, 6.0
        %v1664 = vmin.f32 %v1632, 6.0
        %v1665 = vmin.f32 %v1633, 6.0
        %v1666 = vmin.f32 %v1634, 6.0
        %v1667 = vmin.f32 %v1635, 6.0
        %v1668 = vmin.f32 %v1636, 6.0
        %v1669 = vmin.f32 %v1637, 6.0
        %v1670 = vmin.f32 %v1638, 6.0
        %v1671 = vmin.f32 %v1639, 6.0
        %v1672 = vmin.f32 %v1640, 6.0
        %v1673 = vmin.f32 %v1641, 6.0
        %v1674 = vmin.f32 %v1642, 6.0
        %v1675 = vmin.f32 %v1643, 6.0
        %v1676 = vmin.f32 %v1644, 6.0
        %v1677 = vmin.f32 %v1645, 6.0
        %v1678 = vmin.f32 %v1646, 6.0
        %v1679 = vmin.f32 %v1647, 6.0
        %v1680 = vmin.f32 %v1648, 6.0
        %v1681 = vmin.f32 %v1649, 6.0
        %v1682 = vmin.f32 %v1650, 6.0
        %v1683 = vmin.f32 %v1651, 6.0
        %v1684 = vmin.f32 %v1652, 6.0
        %v1685 = vmin.f32 %v1653, 6.0
        %v1686 = vmin.f32 %v1654, 6.0
        %v1687 = vmin.f32 %v1655, 6.0
        %v1688 = vpack.c.bf16 %v1657, %v1656
        %v1689 = vpack.c.bf16 %v1659, %v1658
        %v1690 = vpack.c.bf16 %v1661, %v1660
        %v1691 = vpack.c.bf16 %v1663, %v1662
        %v1692 = vpack.c.bf16 %v1665, %v1664
        %v1693 = vpack.c.bf16 %v1667, %v1666
        %v1694 = vpack.c.bf16 %v1669, %v1668
        %v1695 = vpack.c.bf16 %v1671, %v1670
        %v1696 = vpack.c.bf16 %v1673, %v1672
        %v1697 = vpack.c.bf16 %v1675, %v1674
        %v1698 = vpack.c.bf16 %v1677, %v1676
        %v1699 = vpack.c.bf16 %v1679, %v1678
        %v1700 = vpack.c.bf16 %v1681, %v1680
        %v1701 = vpack.c.bf16 %v1683, %v1682
        %v1702 = vpack.c.bf16 %v1685, %v1684
        %v1703 = vpack.c.bf16 %v1687, %v1686
        %v1704 = vld [vmem:[%s5] sm:$0x3]
        %v1705 = vld [vmem:[%s6] sm:$0x3]
        %v1707 = vsel %vm422, %v1705, 0
        %1709 = vmatpush.bf16.xpose.msra.mxu0 %v445
        %1710 = vmatpush.bf16.xpose.msra.mxu0 %v442
        %1711 = vmatpush.bf16.xpose.msra.mxu0 %v439
        %1712 = vmatpush.bf16.xpose.msra.mxu0 %v436
        %1713 = vmatpush.bf16.xpose.msra.mxu0 %v433
        %1714 = vmatpush.bf16.xpose.msra.mxu0 %v430
        %1715 = vmatpush.bf16.xpose.msra.mxu0 %v427
        %1716 = vmatpush.bf16.xpose.msra.mxu0 %v424
        %1717 = vmatmul.bf16.gmra.mxu0 %v1707
        %v1718 = vpop.f32.mrf.mxu0
        %v1719 = vadd.f32 0.0, %v1718
        %v1720 = vpop.f32.mrf.mxu0
        %1721 = vdwg.mxu0
        %1722 = vmatpush.bf16.xpose.msra.mxu0 %v469
        %1723 = vmatpush.bf16.xpose.msra.mxu0 %v466
        %1724 = vmatpush.bf16.xpose.msra.mxu0 %v463
        %1725 = vmatpush.bf16.xpose.msra.mxu0 %v460
        %1726 = vmatpush.bf16.xpose.msra.mxu0 %v457
        %1727 = vmatpush.bf16.xpose.msra.mxu0 %v454
        %1728 = vmatpush.bf16.xpose.msra.mxu0 %v451
        %1729 = vmatpush.bf16.xpose.msra.mxu0 %v448
        %1730 = vmatmul.bf16.gmra.mxu0 %v1707
        %v1731 = vpop.f32.mrf.mxu0
        %v1732 = vadd.f32 0.0, %v1731
        %v1733 = vpop.f32.mrf.mxu0
        %1734 = vdwg.mxu0
        %v1736 = vsel %vm628, %v1704, 0
        %v1739 = vsel %vm628, %v1688, 0
        %v1742 = vsel %vm628, %v1689, 0
        %v1745 = vsel %vm628, %v1690, 0
        %v1748 = vsel %vm628, %v1691, 0
        %v1751 = vsel %vm628, %v1692, 0
        %v1754 = vsel %vm628, %v1693, 0
        %v1757 = vsel %vm628, %v1694, 0
        %v1760 = vsel %vm628, %v1695, 0
        %v1763 = vsel %vm628, %v1696, 0
        %v1766 = vsel %vm628, %v1697, 0
        %v1769 = vsel %vm628, %v1698, 0
        %v1772 = vsel %vm628, %v1699, 0
        %v1775 = vsel %vm628, %v1700, 0
        %v1778 = vsel %vm628, %v1701, 0
        %v1781 = vsel %vm628, %v1702, 0
        %v1784 = vsel %vm628, %v1703, 0
        %1786 = vmatpush.bf16.xpose.msra.mxu0 %v1760
        %1787 = vmatpush.bf16.xpose.msra.mxu0 %v1757
        %1788 = vmatpush.bf16.xpose.msra.mxu0 %v1754
        %1789 = vmatpush.bf16.xpose.msra.mxu0 %v1751
        %1790 = vmatpush.bf16.xpose.msra.mxu0 %v1748
        %1791 = vmatpush.bf16.xpose.msra.mxu0 %v1745
        %1792 = vmatpush.bf16.xpose.msra.mxu0 %v1742
        %1793 = vmatpush.bf16.xpose.msra.mxu0 %v1739
        %1794 = vmatmul.bf16.gmra.mxu0 %v1736
        %v1795 = vpop.f32.mrf.mxu0
        %v1796 = vadd.f32 %v1719, %v1795
        %v1797 = vpop.f32.mrf.mxu0
        %1798 = vdwg.mxu0
        %1799 = vmatpush.bf16.xpose.msra.mxu0 %v1784
        %1800 = vmatpush.bf16.xpose.msra.mxu0 %v1781
        %1801 = vmatpush.bf16.xpose.msra.mxu0 %v1778
        %1802 = vmatpush.bf16.xpose.msra.mxu0 %v1775
        %1803 = vmatpush.bf16.xpose.msra.mxu0 %v1772
        %1804 = vmatpush.bf16.xpose.msra.mxu0 %v1769
        %1805 = vmatpush.bf16.xpose.msra.mxu0 %v1766
        %1806 = vmatpush.bf16.xpose.msra.mxu0 %v1763
        %1807 = vmatmul.bf16.gmra.mxu0 %v1736
        %v1808 = vpop.f32.mrf.mxu0
        %v1809 = vadd.f32 %v1732, %v1808
        %v1810 = vpop.f32.mrf.mxu0
        %1811 = vdwg.mxu0
        %v1812 = vld [vmem:[%s7] sm:$0xf]
        %1814 = vset.pattern.permute.xlu0 0
        %1815 = vperm.xlu0 %1814, %v1812
        %v1816 = vpop.permute.xlu0 %1815
        %v1818 = vadd.f32 %v1796, %v1816
        %v1819 = vadd.f32 %v1809, %v1816
        %v1822 = vrot.slane %v1819, 4
        %vm1823 = vcmask 1043456
        %v1824 = vsel %vm1823, %v1818, %v1822
        %1826 = vst [vmem:[%s298] sm:$0xff] %v1824
        %s1827 = sand.u32 %s203, 1
        %s1828 = scalar_lea.sflag [#allocation4], %s1827
        %s1829 = sand.u32 %s203, 1
        %s1830 = smul.addr %s1829, 8
        %s1831 = scalar_lea.vmem [#allocation3], %s1830
        // Predicated region
        $region53: #{tpu_custom_call.1} parent=51 // pred_check
          %p1832 = pneg %p213
        $region54: #{tpu_custom_call.1} parent=51 // pred_check_branch
          %1834 = sbr.rel (%p1832) target = $region56
        $region55: #{tpu_custom_call.1} parent=51 // pred_region
          %1836 = vsyncadd %s1828, 0
          %s1837 = smul.addr %s22, 2
          %s1838 = smul.addr %s1837, 4
          %s1839 = scalar_lea.hbm %s8, %s1838
          %s1841 = sshll.u32 %s1831, 4
          %s1842 = int_to_ptr.vmem [resolvable:$true] %s1841
          %s1843 = sshll.u32 %s1839, 4
          %s1844 = int_to_ptr.hbm [resolvable:$true] %s1843
          %1846 = dma.vmem_to_hbm [thread:$0]  %s1842, 128, %s1844, %s1828
        $region56: #{tpu_custom_call.1} parent=51 // pred_fallthru
          _
      $region52: #{tpu_custom_call.1} parent=5 // pred_fallthru
        _
      %p1847 = scmp.le.s32.totalorder 2, %s17
      // Predicated region
      $region57: #{tpu_custom_call.1} parent=5 // pred_check
        %p1848 = pneg %p1847
      $region58: #{tpu_custom_call.1} parent=5 // pred_check_branch
        %1850 = sbr.rel (%p1848) target = $region60
      $region59: #{tpu_custom_call.1} parent=5 // pred_region
        %s1851 = ssub.s32 %s17, 2
        // Predicated region
        $region61: #{tpu_custom_call.1} parent=59 // pred_check
          %p1852 = pneg %p219
        $region62: #{tpu_custom_call.1} parent=59 // pred_check_branch
          %1854 = sbr.rel (%p1852) target = $region64
        $region63: #{tpu_custom_call.1} parent=59 // pred_region
          %s1855 = sand.u32 %s204, 1
          %s1856 = scalar_lea.sflag [#allocation4], %s1855
          %s1857 = sand.u32 %s204, 1
          %s1858 = smul.addr %s1857, 8
          %s1859 = scalar_lea.vmem [#allocation3], %s1858
          %1861 = dma.done %s1856, 128
        $region64: #{tpu_custom_call.1} parent=59 // pred_fallthru
          _
      $region60: #{tpu_custom_call.1} parent=5 // pred_fallthru
        _
    $region6: #{tpu_custom_call.1} parent=1 // loop_footer
      %s21 = sadd.s32 1, %s17
    $region7: #{tpu_custom_call.1} parent=1 // loop_footer_branch
      %16 = sbr.rel target = $region3
    $region8: #{tpu_custom_call.1} parent=1 // loop_exit
      _
    %1862 = vsyncpa [#allocation4], 1
    %s1863 = scalar_lea.sflag [#allocation4], 1
    %1864 = vsyncpa %s1863, 1

</llo_original>
